<compile_context>
chip_gen: v6e
topology: v6e:2x2x1
jax: 0.10.0
libtpu: 0.0.40
codegen_flags: <defaults>
</compile_context>

<pallas_src>
import functools

import jax
import jax.numpy as jnp
from jax import lax
from jax.experimental import pallas as pl
from jax.experimental.pallas import tpu as pltpu


# ----------------------------------------------------------------------------
# Pallas kernel: one (batch, query-tile) pair per grid step.  Channels-first.
# ----------------------------------------------------------------------------
def _pt_block_kernel(N, K, T, d_model, mm_dtype, approx_recip,
                     table_ref, xyzt_ref, featt_ref, idx_ref,
                     wq_ref, bq_ref, wd1_ref, bd1_ref, wd2_ref, bd2_ref,
                     wg1_ref, bg1_ref, wg2_ref, bg2_ref, w2_ref, b2_ref,
                     out_ref):
    f32 = jnp.float32

    def mm(w, x):
        # Weights are pre-cast to mm_dtype in the wrapper; activations are cast
        # here; accumulation stays f32 on the MXU.
        return jnp.dot(w, x.astype(mm_dtype), preferred_element_type=f32)

    feat_t = featt_ref[0]                                   # (d_points, T) f32
    # fc1 folded into w_qs:  q = (w1@wq)^T @ feat + (b1@wq)^T
    q_t = mm(wq_ref[...], feat_t) + bq_ref[...]             # (d_model, T)

    # ---- gather xyz|k|v of all K neighbours with ONE one-hot matmul ----------
    iota_nt = lax.broadcasted_iota(jnp.int32, (N, T), 0)
    oh = jnp.concatenate(
        [(iota_nt == idx_ref[0, j, :][None, :]).astype(mm_dtype) for j in range(K)],
        axis=1)                                             # (N, K*T) one-hot
    gathered = jnp.dot(table_ref[0], oh, preferred_element_type=f32)   # (R, K*T)
    kx = gathered[0:3, :]                                   # neighbour xyz
    kf = gathered[8:8 + d_model, :]                         # neighbour k
    vf = gathered[8 + d_model:8 + 2 * d_model, :]           # neighbour v

    # ---- fc_delta: layer 1 as three VPU FMAs (contraction dim is only 3) -----
    xyz_t = xyzt_ref[0]                                     # (3, T) f32 (query xyz)
    rel = jnp.concatenate([xyz_t] * K, axis=1) - kx         # (3, K*T)
    wd1 = wd1_ref[...]                                      # (d_model, 3) f32
    bd1 = bd1_ref[...]                                      # (d_model, 1)
    h = (wd1[:, 0:1] * rel[0:1, :] + wd1[:, 1:2] * rel[1:2, :]
         + wd1[:, 2:3] * rel[2:3, :] + bd1)
    pos = mm(wd2_ref[...], jnp.maximum(h, 0.0)) + bd2_ref[...]        # (d_model, K*T)

    # ---- fc_gamma (1/sqrt(d_model) pre-folded into wg2/bg2) ------------------
    a = jnp.concatenate([q_t] * K, axis=1) - kf + pos
    g = jnp.maximum(mm(wg1_ref[...], a) + bg1_ref[...], 0.0)
    logits = mm(wg2_ref[...], g) + bg2_ref[...]                       # (d_model, K*T)

    # ---- softmax over the K neighbours + weighted sum of (v + pos) -----------
    m = logits[:, 0:T]
    for j in range(1, K):
        m = jnp.maximum(m, logits[:, j * T:(j + 1) * T])
    denom = jnp.exp(logits[:, 0:T] - m)
    acc = denom * (vf[:, 0:T] + pos[:, 0:T])
    for j in range(1, K):
        e = jnp.exp(logits[:, j * T:(j + 1) * T] - m)
        denom = denom + e
        acc = acc + e * (vf[:, j * T:(j + 1) * T] + pos[:, j * T:(j + 1) * T])
    if approx_recip:
        # denom >= 1 (max subtracted), so the EUP approximate reciprocal is safe here.
        res = acc * pl.reciprocal(denom, approx=True)
    else:
        res = acc / denom                                             # (d_model, T)

    # ---- fc2 + residual; lane-dense (d_points, T) store, PyTorch layout ------
    out = mm(w2_ref[...], res) + b2_ref[...] + feat_t
    out_ref[0] = out.astype(out_ref.dtype)


# ----------------------------------------------------------------------------
# Wrapper: kNN + weight folding + full-N K/V in plain JAX, rest in the kernel.
# ----------------------------------------------------------------------------
def _vmem_limit_bytes():
    cap = 128 * 1024 * 1024
    try:
        info = pltpu.get_tpu_info()
        cap = int(getattr(info, "vmem_capacity_bytes", cap) or cap)
    except Exception:
        pass
    # ~3/4 of physical VMEM with headroom: ~96 MiB on v5e/v6e, ~48 MiB on v7x.
    return min(cap * 3 // 4, 96 * 1024 * 1024)


def transformer_block(xyz, features, params, k, *, tile_n=None,
                      matmul_dtype=jnp.bfloat16, approx_reciprocal=True):
    """xyz: (B, N, 3) f32; features: (B, d_points, N) f32 (PyTorch layout).
    Returns (B, d_points, N), matching TransformerBlock.forward."""
    B, N, _ = xyz.shape
    d_points = features.shape[1]
    d_model = params["w1"].shape[1]
    f32 = jnp.float32

    if tile_n is None:
        tile_n = 256 if N % 256 == 0 else (128 if N % 128 == 0 else N)
    tile_n = min(tile_n, N)
    if N % tile_n != 0:
        raise ValueError(f"N={N} must be a multiple of tile_n={tile_n}")
    n_tiles = N // tile_n

    # TODO(synk): kNN neighbour selection (dense O(N^2) distances + top_k) stays in
    # plain JAX -- no clean Pallas TPU sort/top-k; tile it blockwise for large N.
    sq = jnp.sum(xyz * xyz, axis=-1)
    d2 = sq[:, :, None] + sq[:, None, :] - 2.0 * jnp.einsum("bnd,bmd->bnm", xyz, xyz)
    _, knn_idx = lax.top_k(-d2, k)                                    # O(N*k) selection
    idx_t = jnp.transpose(knn_idx, (0, 2, 1)).astype(jnp.int32)       # (B, k, N), lane-dense

    # ---- exact weight folds: fc1 into w_qs/w_ks/w_vs, softmax scale into fc_gamma[2]
    scale = 1.0 / (float(d_model) ** 0.5)
    wq_f = (params["w1"] @ params["wq"]).T                            # (d_model, d_points)
    bq_f = (params["b1"] @ params["wq"]).T                            # (d_model, 1)
    wk_f = (params["w1"] @ params["wk"]).T
    bk_f = (params["b1"] @ params["wk"]).T
    wv_f = (params["w1"] @ params["wv"]).T
    bv_f = (params["b1"] @ params["wv"]).T

    # ---- K/V of all N points in plain XLA (good MXU shape), stacked with xyz into
    #      one gather table: rows = [xyz(3) | zero-pad(5) | k(d_model) | v(d_model)]
    wkv = jnp.concatenate([wk_f, wv_f], axis=0)                       # (2*d_model, d_points)
    bkv = jnp.concatenate([bk_f, bv_f], axis=0)                       # (2*d_model, 1)
    kv = jnp.einsum("cd,bdn->bcn", wkv, features) + bkv[None]         # (B, 2*d_model, N)
    xyz_cf = jnp.transpose(xyz, (0, 2, 1))                            # (B, 3, N)
    pad = jnp.zeros((B, 5, N), f32)
    table = jnp.concatenate([xyz_cf, pad, kv], axis=1).astype(matmul_dtype)  # (B, R, N)
    R = table.shape[1]

    weights = [
        wq_f.astype(matmul_dtype), bq_f.astype(f32),
        params["wd1"].T.astype(f32),                                  # used as VPU FMAs
        params["bd1"].reshape(-1, 1).astype(f32),
        params["wd2"].T.astype(matmul_dtype), params["bd2"].reshape(-1, 1).astype(f32),
        params["wg1"].T.astype(matmul_dtype), params["bg1"].reshape(-1, 1).astype(f32),
        (params["wg2"].T * scale).astype(matmul_dtype),
        (params["bg2"].reshape(-1, 1) * scale).astype(f32),
        params["w2"].T.astype(matmul_dtype), params["b2"].reshape(-1, 1).astype(f32),
    ]
    weight_specs = [pl.BlockSpec(w.shape, lambda b, t: (0, 0)) for w in weights]

    kernel = functools.partial(_pt_block_kernel, N, k, tile_n, d_model,
                               matmul_dtype, approx_reciprocal)

    return pl.pallas_call(
        kernel,
        out_shape=jax.ShapeDtypeStruct((B, d_points, N), features.dtype),
        grid_spec=pltpu.PrefetchScalarGridSpec(
            num_scalar_prefetch=0,
            grid=(B, n_tiles),
            in_specs=[
                # full-N gather table; block index only changes with b, so the
                # pipeline does not re-DMA it across tiles of one batch element.
                # TODO(synk): memory_space=pl.ANY + one manual DMA per batch element
                # would single-buffer this table on v7x's 64 MiB VMEM at large N.
                pl.BlockSpec((1, R, N), lambda b, t: (b, 0, 0)),
                pl.BlockSpec((1, 3, tile_n), lambda b, t: (b, 0, t)),         # query xyz tile
                pl.BlockSpec((1, d_points, tile_n), lambda b, t: (b, 0, t)),  # feature tile (q + residual)
                pl.BlockSpec((1, k, tile_n), lambda b, t: (b, 0, t)),         # knn idx tile
            ] + weight_specs,
            out_specs=pl.BlockSpec((1, d_points, tile_n), lambda b, t: (b, 0, t)),
        ),
        compiler_params=pltpu.CompilerParams(
            dimension_semantics=("parallel", "parallel"),
            vmem_limit_bytes=_vmem_limit_bytes(),
        ),
    )(table, xyz_cf, features, idx_t, *weights)


# ----------------------------------------------------------------------------
# Pure-JAX reference (mirrors the PyTorch forward exactly).
# ----------------------------------------------------------------------------
def transformer_block_ref(xyz, features, params, k):
    feat = jnp.transpose(features, (0, 2, 1))
    sq = jnp.sum(xyz * xyz, axis=-1)
    d2 = sq[:, :, None] + sq[:, None, :] - 2.0 * jnp.einsum("bnd,bmd->bnm", xyz, xyz)
    knn_idx = jnp.argsort(d2, axis=-1)[:, :, :k]

    gather = jax.vmap(lambda pts, idx: pts[idx])                      # index_points
    knn_xyz = gather(xyz, knn_idx)                                    # (B, N, k, 3)

    pre = feat
    x = feat @ params["w1"] + params["b1"]
    q = x @ params["wq"]
    k_ = gather(x @ params["wk"], knn_idx)
    v_ = gather(x @ params["wv"], knn_idx)

    rel = xyz[:, :, None, :] - knn_xyz
    pos = jnp.maximum(rel @ params["wd1"] + params["bd1"], 0.0) @ params["wd2"] + params["bd2"]
    a_in = q[:, :, None, :] - k_ + pos
    attn = jnp.maximum(a_in @ params["wg1"] + params["bg1"], 0.0) @ params["wg2"] + params["bg2"]
    attn = jax.nn.softmax(attn / (float(k_.shape[-1]) ** 0.5), axis=-2)
    res = jnp.einsum("bmnf,bmnf->bmf", attn, v_ + pos)
    res = res @ params["w2"] + params["b2"] + pre
    return jnp.transpose(res, (0, 2, 1))


# ----------------------------------------------------------------------------
def make_params(key, d_points, d_model):
    keys = jax.random.split(key, 10)
    s = 0.1
    f32 = jnp.float32
    return {
        "w1": (s * jax.random.normal(keys[0], (d_points, d_model))).astype(f32),
        "b1": (s * jax.random.normal(keys[1], (1, d_model))).astype(f32),
        "wq": (s * jax.random.normal(keys[2], (d_model, d_model))).astype(f32),
        "wk": (s * jax.random.normal(keys[3], (d_model, d_model))).astype(f32),
        "wv": (s * jax.random.normal(keys[4], (d_model, d_model))).astype(f32),
        "wd1": (s * jax.random.normal(keys[5], (3, d_model))).astype(f32),
        "bd1": jnp.zeros((1, d_model), f32),
        "wd2": (s * jax.random.normal(keys[6], (d_model, d_model))).astype(f32),
        "bd2": jnp.zeros((1, d_model), f32),
        "wg1": (s * jax.random.normal(keys[7], (d_model, d_model))).astype(f32),
        "bg1": jnp.zeros((1, d_model), f32),
        "wg2": (s * jax.random.normal(keys[8], (d_model, d_model))).astype(f32),
        "bg2": jnp.zeros((1, d_model), f32),
        "w2": (s * jax.random.normal(keys[9], (d_model, d_points))).astype(f32),
        "b2": jnp.zeros((1, d_points), f32),
    }


if __name__ == "__main__":
    B, N, d_points, d_model, K = 2, 256, 16, 32, 4

    key = jax.random.PRNGKey(0)
    kx, kf, kp = jax.random.split(key, 3)
    xyz = jax.random.normal(kx, (B, N, 3), dtype=jnp.float32)
    features = jax.random.normal(kf, (B, d_points, N), dtype=jnp.float32)
    params = make_params(kp, d_points, d_model)

    ref = jax.block_until_ready(transformer_block_ref(xyz, features, params, K))

    # f32 matmul operands, tile_n=128 (2 tiles per batch element): tight check.
    out = jax.block_until_ready(
        transformer_block(xyz, features, params, K, tile_n=128,
                          matmul_dtype=jnp.float32))
    assert out.shape == (B, d_points, N), out.shape
    err = float(jnp.max(jnp.abs(out - ref)))
    assert jnp.allclose(out, ref, atol=2e-2, rtol=2e-2), err

    # Defaults: bf16 matmul operands (f32 MXU accumulation), auto tile (256 -> 1 tile).
    out_bf16 = jax.block_until_ready(transformer_block(xyz, features, params, K))
    err_bf16 = float(jnp.max(jnp.abs(out_bf16 - ref)))
    assert jnp.allclose(out_bf16, ref, atol=1.5e-1, rtol=1.5e-1), err_bf16

    print("KERNEL_OK")
</pallas_src>

<mosaic_0001>
module attributes {stable_mosaic.version = 11 : i64} {
  func.func @_pt_block_kernel(%arg0: i32, %arg1: i32, %arg2: memref<1x72x256xf32, #tpu.memory_space<vmem>>, %arg3: memref<1x3x128xf32, #tpu.memory_space<vmem>>, %arg4: memref<1x16x128xf32, #tpu.memory_space<vmem>>, %arg5: memref<1x4x128xi32, #tpu.memory_space<vmem>>, %arg6: memref<32x16xf32, #tpu.memory_space<vmem>>, %arg7: memref<32x1xf32, #tpu.memory_space<vmem>>, %arg8: memref<32x3xf32, #tpu.memory_space<vmem>>, %arg9: memref<32x1xf32, #tpu.memory_space<vmem>>, %arg10: memref<32x32xf32, #tpu.memory_space<vmem>>, %arg11: memref<32x1xf32, #tpu.memory_space<vmem>>, %arg12: memref<32x32xf32, #tpu.memory_space<vmem>>, %arg13: memref<32x1xf32, #tpu.memory_space<vmem>>, %arg14: memref<32x32xf32, #tpu.memory_space<vmem>>, %arg15: memref<32x1xf32, #tpu.memory_space<vmem>>, %arg16: memref<16x32xf32, #tpu.memory_space<vmem>>, %arg17: memref<16x1xf32, #tpu.memory_space<vmem>>, %arg18: memref<1x16x128xf32, #tpu.memory_space<vmem>>) attributes {dimension_semantics = [#tpu.dimension_semantics<parallel>, #tpu.dimension_semantics<parallel>], iteration_bounds = array<i64: 2, 2>, scalar_prefetch = 0 : i64, scratch_operands = 0 : i64, tpu.core_type = #tpu.core_type<tc>, window_params = [{transform_indices = @transform_0, window_bounds = array<i64: 1, 72, 256>}, {transform_indices = @transform_1, window_bounds = array<i64: 1, 3, 128>}, {transform_indices = @transform_2, window_bounds = array<i64: 1, 16, 128>}, {transform_indices = @transform_3, window_bounds = array<i64: 1, 4, 128>}, {pipeline_mode = #tpu.pipeline_mode<synchronous>, transform_indices = @transform_4, window_bounds = array<i64: 32, 16>}, {pipeline_mode = #tpu.pipeline_mode<synchronous>, transform_indices = @transform_5, window_bounds = array<i64: 32, 1>}, {pipeline_mode = #tpu.pipeline_mode<synchronous>, transform_indices = @transform_6, window_bounds = array<i64: 32, 3>}, {pipeline_mode = #tpu.pipeline_mode<synchronous>, transform_indices = @transform_7, window_bounds = array<i64: 32, 1>}, {pipeline_mode = #tpu.pipeline_mode<synchronous>, transform_indices = @transform_8, window_bounds = array<i64: 32, 32>}, {pipeline_mode = #tpu.pipeline_mode<synchronous>, transform_indices = @transform_9, window_bounds = array<i64: 32, 1>}, {pipeline_mode = #tpu.pipeline_mode<synchronous>, transform_indices = @transform_10, window_bounds = array<i64: 32, 32>}, {pipeline_mode = #tpu.pipeline_mode<synchronous>, transform_indices = @transform_11, window_bounds = array<i64: 32, 1>}, {pipeline_mode = #tpu.pipeline_mode<synchronous>, transform_indices = @transform_12, window_bounds = array<i64: 32, 32>}, {pipeline_mode = #tpu.pipeline_mode<synchronous>, transform_indices = @transform_13, window_bounds = array<i64: 32, 1>}, {pipeline_mode = #tpu.pipeline_mode<synchronous>, transform_indices = @transform_14, window_bounds = array<i64: 16, 32>}, {pipeline_mode = #tpu.pipeline_mode<synchronous>, transform_indices = @transform_15, window_bounds = array<i64: 16, 1>}, {transform_indices = @transform_16, window_bounds = array<i64: 1, 16, 128>}]} {
    %c0 = arith.constant 0 : index
    %c0_0 = arith.constant 0 : index
    %c0_1 = arith.constant 0 : index
    %0 = vector.load %arg4[%c0, %c0_0, %c0_1] : memref<1x16x128xf32, #tpu.memory_space<vmem>>, vector<1x16x128xf32>
    %1 = vector.shape_cast %0 : vector<1x16x128xf32> to vector<16x128xf32>
    %c0_2 = arith.constant 0 : index
    %c0_3 = arith.constant 0 : index
    %2 = vector.load %arg6[%c0_2, %c0_3] : memref<32x16xf32, #tpu.memory_space<vmem>>, vector<32x16xf32>
    %cst = arith.constant dense<0.000000e+00> : vector<32x128xf32>
    %3 = tpu.matmul %2, %1, %cst {dimension_numbers = #tpu.dot_dimension_numbers<[1], [0], [0], [1], [0, 0, 1, 1], [], []>} : vector<32x16xf32>, vector<16x128xf32>, vector<32x128xf32> -> vector<32x128xf32>
    %c0_4 = arith.constant 0 : index
    %c0_5 = arith.constant 0 : index
    %4 = vector.load %arg7[%c0_4, %c0_5] : memref<32x1xf32, #tpu.memory_space<vmem>>, vector<32x1xf32>
    %5 = vector.broadcast %4 : vector<32x1xf32> to vector<32x128xf32>
    %6 = arith.addf %3, %5 : vector<32x128xf32>
    %7 = tpu.iota {dimensions = array<i32: 0>} : vector<256x128xi32>
    %c0_6 = arith.constant 0 : index
    %c0_7 = arith.constant 0 : index
    %c0_8 = arith.constant 0 : index
    %8 = vector.load %arg5[%c0_6, %c0_7, %c0_8] : memref<1x4x128xi32, #tpu.memory_space<vmem>>, vector<1x1x128xi32>
    %9 = vector.shape_cast %8 : vector<1x1x128xi32> to vector<128xi32>
    %10 = vector.shape_cast %9 : vector<128xi32> to vector<1x128xi32>
    %11 = vector.broadcast %10 : vector<1x128xi32> to vector<256x128xi32>
    %12 = arith.cmpi eq, %7, %11 : vector<256x128xi32>
    %13 = arith.extui %12 : vector<256x128xi1> to vector<256x128xi32>
    %14 = arith.sitofp %13 : vector<256x128xi32> to vector<256x128xf32>
    %c0_9 = arith.constant 0 : index
    %c1 = arith.constant 1 : index
    %c0_10 = arith.constant 0 : index
    %15 = vector.load %arg5[%c0_9, %c1, %c0_10] : memref<1x4x128xi32, #tpu.memory_space<vmem>>, vector<1x1x128xi32>
    %16 = vector.shape_cast %15 : vector<1x1x128xi32> to vector<128xi32>
    %17 = vector.shape_cast %16 : vector<128xi32> to vector<1x128xi32>
    %18 = vector.broadcast %17 : vector<1x128xi32> to vector<256x128xi32>
    %19 = arith.cmpi eq, %7, %18 : vector<256x128xi32>
    %20 = arith.extui %19 : vector<256x128xi1> to vector<256x128xi32>
    %21 = arith.sitofp %20 : vector<256x128xi32> to vector<256x128xf32>
    %c0_11 = arith.constant 0 : index
    %c2 = arith.constant 2 : index
    %c0_12 = arith.constant 0 : index
    %22 = vector.load %arg5[%c0_11, %c2, %c0_12] : memref<1x4x128xi32, #tpu.memory_space<vmem>>, vector<1x1x128xi32>
    %23 = vector.shape_cast %22 : vector<1x1x128xi32> to vector<128xi32>
    %24 = vector.shape_cast %23 : vector<128xi32> to vector<1x128xi32>
    %25 = vector.broadcast %24 : vector<1x128xi32> to vector<256x128xi32>
    %26 = arith.cmpi eq, %7, %25 : vector<256x128xi32>
    %27 = arith.extui %26 : vector<256x128xi1> to vector<256x128xi32>
    %28 = arith.sitofp %27 : vector<256x128xi32> to vector<256x128xf32>
    %c0_13 = arith.constant 0 : index
    %c3 = arith.constant 3 : index
    %c0_14 = arith.constant 0 : index
    %29 = vector.load %arg5[%c0_13, %c3, %c0_14] : memref<1x4x128xi32, #tpu.memory_space<vmem>>, vector<1x1x128xi32>
    %30 = vector.shape_cast %29 : vector<1x1x128xi32> to vector<128xi32>
    %31 = vector.shape_cast %30 : vector<128xi32> to vector<1x128xi32>
    %32 = vector.broadcast %31 : vector<1x128xi32> to vector<256x128xi32>
    %33 = arith.cmpi eq, %7, %32 : vector<256x128xi32>
    %34 = arith.extui %33 : vector<256x128xi1> to vector<256x128xi32>
    %35 = arith.sitofp %34 : vector<256x128xi32> to vector<256x128xf32>
    %36 = tpu.concatenate %14, %21, %28, %35 in 1 : vector<256x128xf32>, vector<256x128xf32>, vector<256x128xf32>, vector<256x128xf32> -> vector<256x512xf32>
    %c0_15 = arith.constant 0 : index
    %c0_16 = arith.constant 0 : index
    %c0_17 = arith.constant 0 : index
    %37 = vector.load %arg2[%c0_15, %c0_16, %c0_17] : memref<1x72x256xf32, #tpu.memory_space<vmem>>, vector<1x72x256xf32>
    %38 = vector.shape_cast %37 : vector<1x72x256xf32> to vector<72x256xf32>
    %cst_18 = arith.constant dense<0.000000e+00> : vector<72x512xf32>
    %39 = tpu.matmul %38, %36, %cst_18 {dimension_numbers = #tpu.dot_dimension_numbers<[1], [0], [0], [1], [0, 0, 1, 1], [], []>} : vector<72x256xf32>, vector<256x512xf32>, vector<72x512xf32> -> vector<72x512xf32>
    %40 = vector.extract_strided_slice %39 {offsets = [0, 0], sizes = [3, 512], strides = [1, 1]} : vector<72x512xf32> to vector<3x512xf32>
    %41 = vector.extract_strided_slice %39 {offsets = [8, 0], sizes = [32, 512], strides = [1, 1]} : vector<72x512xf32> to vector<32x512xf32>
    %42 = vector.extract_strided_slice %39 {offsets = [40, 0], sizes = [32, 512], strides = [1, 1]} : vector<72x512xf32> to vector<32x512xf32>
    %c0_19 = arith.constant 0 : index
    %c0_20 = arith.constant 0 : index
    %c0_21 = arith.constant 0 : index
    %43 = vector.load %arg3[%c0_19, %c0_20, %c0_21] : memref<1x3x128xf32, #tpu.memory_space<vmem>>, vector<1x3x128xf32>
    %44 = vector.shape_cast %43 : vector<1x3x128xf32> to vector<3x128xf32>
    %45 = tpu.concatenate %44, %44, %44, %44 in 1 : vector<3x128xf32>, vector<3x128xf32>, vector<3x128xf32>, vector<3x128xf32> -> vector<3x512xf32>
    %46 = arith.subf %45, %40 : vector<3x512xf32>
    %c0_22 = arith.constant 0 : index
    %c0_23 = arith.constant 0 : index
    %47 = vector.load %arg8[%c0_22, %c0_23] : memref<32x3xf32, #tpu.memory_space<vmem>>, vector<32x3xf32>
    %c0_24 = arith.constant 0 : index
    %c0_25 = arith.constant 0 : index
    %48 = vector.load %arg9[%c0_24, %c0_25] : memref<32x1xf32, #tpu.memory_space<vmem>>, vector<32x1xf32>
    %49 = vector.extract_strided_slice %47 {offsets = [0, 0], sizes = [32, 1], strides = [1, 1]} : vector<32x3xf32> to vector<32x1xf32>
    %50 = vector.extract_strided_slice %46 {offsets = [0, 0], sizes = [1, 512], strides = [1, 1]} : vector<3x512xf32> to vector<1x512xf32>
    %51 = vector.broadcast %49 : vector<32x1xf32> to vector<32x512xf32>
    %52 = vector.broadcast %50 : vector<1x512xf32> to vector<32x512xf32>
    %53 = arith.mulf %51, %52 : vector<32x512xf32>
    %54 = vector.extract_strided_slice %47 {offsets = [0, 1], sizes = [32, 1], strides = [1, 1]} : vector<32x3xf32> to vector<32x1xf32>
    %55 = vector.extract_strided_slice %46 {offsets = [1, 0], sizes = [1, 512], strides = [1, 1]} : vector<3x512xf32> to vector<1x512xf32>
    %56 = vector.broadcast %54 : vector<32x1xf32> to vector<32x512xf32>
    %57 = vector.broadcast %55 : vector<1x512xf32> to vector<32x512xf32>
    %58 = arith.mulf %56, %57 : vector<32x512xf32>
    %59 = arith.addf %53, %58 : vector<32x512xf32>
    %60 = vector.extract_strided_slice %47 {offsets = [0, 2], sizes = [32, 1], strides = [1, 1]} : vector<32x3xf32> to vector<32x1xf32>
    %61 = vector.extract_strided_slice %46 {offsets = [2, 0], sizes = [1, 512], strides = [1, 1]} : vector<3x512xf32> to vector<1x512xf32>
    %62 = vector.broadcast %60 : vector<32x1xf32> to vector<32x512xf32>
    %63 = vector.broadcast %61 : vector<1x512xf32> to vector<32x512xf32>
    %64 = arith.mulf %62, %63 : vector<32x512xf32>
    %65 = arith.addf %59, %64 : vector<32x512xf32>
    %66 = vector.broadcast %48 : vector<32x1xf32> to vector<32x512xf32>
    %67 = arith.addf %65, %66 : vector<32x512xf32>
    %c0_26 = arith.constant 0 : index
    %c0_27 = arith.constant 0 : index
    %68 = vector.load %arg10[%c0_26, %c0_27] : memref<32x32xf32, #tpu.memory_space<vmem>>, vector<32x32xf32>
    %cst_28 = arith.constant 0.000000e+00 : f32
    %69 = vector.broadcast %cst_28 : f32 to vector<32x512xf32>
    %70 = arith.maximumf %67, %69 : vector<32x512xf32>
    %cst_29 = arith.constant dense<0.000000e+00> : vector<32x512xf32>
    %71 = tpu.matmul %68, %70, %cst_29 {dimension_numbers = #tpu.dot_dimension_numbers<[1], [0], [0], [1], [0, 0, 1, 1], [], []>} : vector<32x32xf32>, vector<32x512xf32>, vector<32x512xf32> -> vector<32x512xf32>
    %c0_30 = arith.constant 0 : index
    %c0_31 = arith.constant 0 : index
    %72 = vector.load %arg11[%c0_30, %c0_31] : memref<32x1xf32, #tpu.memory_space<vmem>>, vector<32x1xf32>
    %73 = vector.broadcast %72 : vector<32x1xf32> to vector<32x512xf32>
    %74 = arith.addf %71, %73 : vector<32x512xf32>
    %75 = tpu.concatenate %6, %6, %6, %6 in 1 : vector<32x128xf32>, vector<32x128xf32>, vector<32x128xf32>, vector<32x128xf32> -> vector<32x512xf32>
    %76 = arith.subf %75, %41 : vector<32x512xf32>
    %77 = arith.addf %76, %74 : vector<32x512xf32>
    %c0_32 = arith.constant 0 : index
    %c0_33 = arith.constant 0 : index
    %78 = vector.load %arg12[%c0_32, %c0_33] : memref<32x32xf32, #tpu.memory_space<vmem>>, vector<32x32xf32>
    %cst_34 = arith.constant dense<0.000000e+00> : vector<32x512xf32>
    %79 = tpu.matmul %78, %77, %cst_34 {dimension_numbers = #tpu.dot_dimension_numbers<[1], [0], [0], [1], [0, 0, 1, 1], [], []>} : vector<32x32xf32>, vector<32x512xf32>, vector<32x512xf32> -> vector<32x512xf32>
    %c0_35 = arith.constant 0 : index
    %c0_36 = arith.constant 0 : index
    %80 = vector.load %arg13[%c0_35, %c0_36] : memref<32x1xf32, #tpu.memory_space<vmem>>, vector<32x1xf32>
    %81 = vector.broadcast %80 : vector<32x1xf32> to vector<32x512xf32>
    %82 = arith.addf %79, %81 : vector<32x512xf32>
    %cst_37 = arith.constant 0.000000e+00 : f32
    %83 = vector.broadcast %cst_37 : f32 to vector<32x512xf32>
    %84 = arith.maximumf %82, %83 : vector<32x512xf32>
    %c0_38 = arith.constant 0 : index
    %c0_39 = arith.constant 0 : index
    %85 = vector.load %arg14[%c0_38, %c0_39] : memref<32x32xf32, #tpu.memory_space<vmem>>, vector<32x32xf32>
    %cst_40 = arith.constant dense<0.000000e+00> : vector<32x512xf32>
    %86 = tpu.matmul %85, %84, %cst_40 {dimension_numbers = #tpu.dot_dimension_numbers<[1], [0], [0], [1], [0, 0, 1, 1], [], []>} : vector<32x32xf32>, vector<32x512xf32>, vector<32x512xf32> -> vector<32x512xf32>
    %c0_41 = arith.constant 0 : index
    %c0_42 = arith.constant 0 : index
    %87 = vector.load %arg15[%c0_41, %c0_42] : memref<32x1xf32, #tpu.memory_space<vmem>>, vector<32x1xf32>
    %88 = vector.broadcast %87 : vector<32x1xf32> to vector<32x512xf32>
    %89 = arith.addf %86, %88 : vector<32x512xf32>
    %90 = vector.extract_strided_slice %89 {offsets = [0, 0], sizes = [32, 128], strides = [1, 1]} : vector<32x512xf32> to vector<32x128xf32>
    %91 = vector.extract_strided_slice %89 {offsets = [0, 128], sizes = [32, 128], strides = [1, 1]} : vector<32x512xf32> to vector<32x128xf32>
    %92 = arith.maximumf %90, %91 : vector<32x128xf32>
    %93 = vector.extract_strided_slice %89 {offsets = [0, 256], sizes = [32, 128], strides = [1, 1]} : vector<32x512xf32> to vector<32x128xf32>
    %94 = arith.maximumf %92, %93 : vector<32x128xf32>
    %95 = vector.extract_strided_slice %89 {offsets = [0, 384], sizes = [32, 128], strides = [1, 1]} : vector<32x512xf32> to vector<32x128xf32>
    %96 = arith.maximumf %94, %95 : vector<32x128xf32>
    %97 = vector.extract_strided_slice %89 {offsets = [0, 0], sizes = [32, 128], strides = [1, 1]} : vector<32x512xf32> to vector<32x128xf32>
    %98 = arith.subf %97, %96 : vector<32x128xf32>
    %99 = math.exp %98 : vector<32x128xf32>
    %100 = vector.extract_strided_slice %42 {offsets = [0, 0], sizes = [32, 128], strides = [1, 1]} : vector<32x512xf32> to vector<32x128xf32>
    %101 = vector.extract_strided_slice %74 {offsets = [0, 0], sizes = [32, 128], strides = [1, 1]} : vector<32x512xf32> to vector<32x128xf32>
    %102 = arith.addf %100, %101 : vector<32x128xf32>
    %103 = arith.mulf %99, %102 : vector<32x128xf32>
    %104 = vector.extract_strided_slice %89 {offsets = [0, 128], sizes = [32, 128], strides = [1, 1]} : vector<32x512xf32> to vector<32x128xf32>
    %105 = arith.subf %104, %96 : vector<32x128xf32>
    %106 = math.exp %105 : vector<32x128xf32>
    %107 = arith.addf %99, %106 : vector<32x128xf32>
    %108 = vector.extract_strided_slice %42 {offsets = [0, 128], sizes = [32, 128], strides = [1, 1]} : vector<32x512xf32> to vector<32x128xf32>
    %109 = vector.extract_strided_slice %74 {offsets = [0, 128], sizes = [32, 128], strides = [1, 1]} : vector<32x512xf32> to vector<32x128xf32>
    %110 = arith.addf %108, %109 : vector<32x128xf32>
    %111 = arith.mulf %106, %110 : vector<32x128xf32>
    %112 = arith.addf %103, %111 : vector<32x128xf32>
    %113 = vector.extract_strided_slice %89 {offsets = [0, 256], sizes = [32, 128], strides = [1, 1]} : vector<32x512xf32> to vector<32x128xf32>
    %114 = arith.subf %113, %96 : vector<32x128xf32>
    %115 = math.exp %114 : vector<32x128xf32>
    %116 = arith.addf %107, %115 : vector<32x128xf32>
    %117 = vector.extract_strided_slice %42 {offsets = [0, 256], sizes = [32, 128], strides = [1, 1]} : vector<32x512xf32> to vector<32x128xf32>
    %118 = vector.extract_strided_slice %74 {offsets = [0, 256], sizes = [32, 128], strides = [1, 1]} : vector<32x512xf32> to vector<32x128xf32>
    %119 = arith.addf %117, %118 : vector<32x128xf32>
    %120 = arith.mulf %115, %119 : vector<32x128xf32>
    %121 = arith.addf %112, %120 : vector<32x128xf32>
    %122 = vector.extract_strided_slice %89 {offsets = [0, 384], sizes = [32, 128], strides = [1, 1]} : vector<32x512xf32> to vector<32x128xf32>
    %123 = arith.subf %122, %96 : vector<32x128xf32>
    %124 = math.exp %123 : vector<32x128xf32>
    %125 = arith.addf %116, %124 : vector<32x128xf32>
    %126 = vector.extract_strided_slice %42 {offsets = [0, 384], sizes = [32, 128], strides = [1, 1]} : vector<32x512xf32> to vector<32x128xf32>
    %127 = vector.extract_strided_slice %74 {offsets = [0, 384], sizes = [32, 128], strides = [1, 1]} : vector<32x512xf32> to vector<32x128xf32>
    %128 = arith.addf %126, %127 : vector<32x128xf32>
    %129 = arith.mulf %124, %128 : vector<32x128xf32>
    %130 = arith.addf %121, %129 : vector<32x128xf32>
    %131 = tpu.reciprocal %125 {approx = true} : vector<32x128xf32> -> vector<32x128xf32>
    %132 = arith.mulf %130, %131 : vector<32x128xf32>
    %c0_43 = arith.constant 0 : index
    %c0_44 = arith.constant 0 : index
    %133 = vector.load %arg16[%c0_43, %c0_44] : memref<16x32xf32, #tpu.memory_space<vmem>>, vector<16x32xf32>
    %cst_45 = arith.constant dense<0.000000e+00> : vector<16x128xf32>
    %134 = tpu.matmul %133, %132, %cst_45 {dimension_numbers = #tpu.dot_dimension_numbers<[1], [0], [0], [1], [0, 0, 1, 1], [], []>} : vector<16x32xf32>, vector<32x128xf32>, vector<16x128xf32> -> vector<16x128xf32>
    %c0_46 = arith.constant 0 : index
    %c0_47 = arith.constant 0 : index
    %135 = vector.load %arg17[%c0_46, %c0_47] : memref<16x1xf32, #tpu.memory_space<vmem>>, vector<16x1xf32>
    %136 = vector.broadcast %135 : vector<16x1xf32> to vector<16x128xf32>
    %137 = arith.addf %134, %136 : vector<16x128xf32>
    %138 = arith.addf %137, %1 : vector<16x128xf32>
    %c0_48 = arith.constant 0 : index
    %c0_49 = arith.constant 0 : index
    %c0_50 = arith.constant 0 : index
    %139 = vector.load %arg18[%c0_48, %c0_49, %c0_50] : memref<1x16x128xf32, #tpu.memory_space<vmem>>, vector<1x16x128xf32>
    %140 = vector.shape_cast %139 : vector<1x16x128xf32> to vector<16x128xf32>
    %141 = vector.shape_cast %138 : vector<16x128xf32> to vector<1x16x128xf32>
    tpu.vector_store %arg18[%c0_48, %c0_49, %c0_50], %141 {strides = array<i32>} : memref<1x16x128xf32, #tpu.memory_space<vmem>>, vector<1x16x128xf32>,
    return
  }
  func.func @transform_0(%arg0: i32, %arg1: i32) -> (i32, i32, i32) {
    %c0_i32 = arith.constant 0 : i32
    %c0_i32_0 = arith.constant 0 : i32
    %c0_i32_1 = arith.constant 0 : i32
    return %arg0, %c0_i32, %c0_i32_0 : i32, i32, i32
  }
  func.func @transform_1(%arg0: i32, %arg1: i32) -> (i32, i32, i32) {
    %c0_i32 = arith.constant 0 : i32
    %c0_i32_0 = arith.constant 0 : i32
    return %arg0, %c0_i32, %arg1 : i32, i32, i32
  }
  func.func @transform_2(%arg0: i32, %arg1: i32) -> (i32, i32, i32) {
    %c0_i32 = arith.constant 0 : i32
    %c0_i32_0 = arith.constant 0 : i32
    return %arg0, %c0_i32, %arg1 : i32, i32, i32
  }
  func.func @transform_3(%arg0: i32, %arg1: i32) -> (i32, i32, i32) {
    %c0_i32 = arith.constant 0 : i32
    %c0_i32_0 = arith.constant 0 : i32
    return %arg0, %c0_i32, %arg1 : i32, i32, i32
  }
  func.func @transform_4(%arg0: i32, %arg1: i32) -> (i32, i32) {
    %c0_i32 = arith.constant 0 : i32
    %c0_i32_0 = arith.constant 0 : i32
    %c0_i32_1 = arith.constant 0 : i32
    return %c0_i32, %c0_i32_0 : i32, i32
  }
  func.func @transform_5(%arg0: i32, %arg1: i32) -> (i32, i32) {
    %c0_i32 = arith.constant 0 : i32
    %c0_i32_0 = arith.constant 0 : i32
    %c0_i32_1 = arith.constant 0 : i32
    return %c0_i32, %c0_i32_0 : i32, i32
  }
  func.func @transform_6(%arg0: i32, %arg1: i32) -> (i32, i32) {
    %c0_i32 = arith.constant 0 : i32
    %c0_i32_0 = arith.constant 0 : i32
    %c0_i32_1 = arith.constant 0 : i32
    return %c0_i32, %c0_i32_0 : i32, i32
  }
  func.func @transform_7(%arg0: i32, %arg1: i32) -> (i32, i32) {
    %c0_i32 = arith.constant 0 : i32
    %c0_i32_0 = arith.constant 0 : i32
    %c0_i32_1 = arith.constant 0 : i32
    return %c0_i32, %c0_i32_0 : i32, i32
  }
  func.func @transform_8(%arg0: i32, %arg1: i32) -> (i32, i32) {
    %c0_i32 = arith.constant 0 : i32
    %c0_i32_0 = arith.constant 0 : i32
    %c0_i32_1 = arith.constant 0 : i32
    return %c0_i32, %c0_i32_0 : i32, i32
  }
  func.func @transform_9(%arg0: i32, %arg1: i32) -> (i32, i32) {
    %c0_i32 = arith.constant 0 : i32
    %c0_i32_0 = arith.constant 0 : i32
    %c0_i32_1 = arith.constant 0 : i32
    return %c0_i32, %c0_i32_0 : i32, i32
  }
  func.func @transform_10(%arg0: i32, %arg1: i32) -> (i32, i32) {
    %c0_i32 = arith.constant 0 : i32
    %c0_i32_0 = arith.constant 0 : i32
    %c0_i32_1 = arith.constant 0 : i32
    return %c0_i32, %c0_i32_0 : i32, i32
  }
  func.func @transform_11(%arg0: i32, %arg1: i32) -> (i32, i32) {
    %c0_i32 = arith.constant 0 : i32
    %c0_i32_0 = arith.constant 0 : i32
    %c0_i32_1 = arith.constant 0 : i32
    return %c0_i32, %c0_i32_0 : i32, i32
  }
  func.func @transform_12(%arg0: i32, %arg1: i32) -> (i32, i32) {
    %c0_i32 = arith.constant 0 : i32
    %c0_i32_0 = arith.constant 0 : i32
    %c0_i32_1 = arith.constant 0 : i32
    return %c0_i32, %c0_i32_0 : i32, i32
  }
  func.func @transform_13(%arg0: i32, %arg1: i32) -> (i32, i32) {
    %c0_i32 = arith.constant 0 : i32
    %c0_i32_0 = arith.constant 0 : i32
    %c0_i32_1 = arith.constant 0 : i32
    return %c0_i32, %c0_i32_0 : i32, i32
  }
  func.func @transform_14(%arg0: i32, %arg1: i32) -> (i32, i32) {
    %c0_i32 = arith.constant 0 : i32
    %c0_i32_0 = arith.constant 0 : i32
    %c0_i32_1 = arith.constant 0 : i32
    return %c0_i32, %c0_i32_0 : i32, i32
  }
  func.func @transform_15(%arg0: i32, %arg1: i32) -> (i32, i32) {
    %c0_i32 = arith.constant 0 : i32
    %c0_i32_0 = arith.constant 0 : i32
    %c0_i32_1 = arith.constant 0 : i32
    return %c0_i32, %c0_i32_0 : i32, i32
  }
  func.func @transform_16(%arg0: i32, %arg1: i32) -> (i32, i32, i32) {
    %c0_i32 = arith.constant 0 : i32
    %c0_i32_0 = arith.constant 0 : i32
    return %arg0, %c0_i32, %arg1 : i32, i32, i32
  }
}

</mosaic_0001>

<llo_original>
// kernel: tpu_custom_call.1
$region0: #{tpu_custom_call.1}
  #allocation0 [shape = 'u32[]', space=smem, size = 0x4, offset = 0x4, fixed_abs, tag = 'smem constant byte address 0x4 - core index']
  #allocation1 [shape = 'u32[144,128]{1,0:T(1,128)}', space=vmem, size = 0x12000, scoped, tag = 'internal scratch']
  %s0 = inlined_call_operand.vmem [shape: f32[2,72,256], index: 0, kind: input, shape index: {}]
  %s1 = inlined_call_operand.vmem [shape: f32[2,3,256], index: 1, kind: input, shape index: {}]
  %s2 = inlined_call_operand.hbm [shape: f32[2,16,256], index: 2, kind: input, shape index: {}]
  %s3 = inlined_call_operand.hbm [shape: s32[2,4,256], index: 3, kind: input, shape index: {}]
  %s4 = inlined_call_operand.vmem [shape: f32[32,16], index: 4, kind: input, shape index: {}]
  %s5 = inlined_call_operand.vmem [shape: f32[32,1], index: 5, kind: input, shape index: {}]
  %s6 = inlined_call_operand.vmem [shape: f32[32,3], index: 6, kind: input, shape index: {}]
  %s7 = inlined_call_operand.vmem [shape: f32[32,1], index: 7, kind: input, shape index: {}]
  %s8 = inlined_call_operand.hbm [shape: f32[32,32], index: 8, kind: input, shape index: {}]
  %s9 = inlined_call_operand.vmem [shape: f32[32,1], index: 9, kind: input, shape index: {}]
  %s10 = inlined_call_operand.hbm [shape: f32[32,32], index: 10, kind: input, shape index: {}]
  %s11 = inlined_call_operand.vmem [shape: f32[32,1], index: 11, kind: input, shape index: {}]
  %s12 = inlined_call_operand.hbm [shape: f32[32,32], index: 12, kind: input, shape index: {}]
  %s13 = inlined_call_operand.vmem [shape: f32[32,1], index: 13, kind: input, shape index: {}]
  %s14 = inlined_call_operand.vmem [shape: f32[16,32], index: 14, kind: input, shape index: {}]
  %s15 = inlined_call_operand.vmem [shape: f32[16,1], index: 15, kind: input, shape index: {}]
  %s16 = inlined_call_operand.hbm [shape: f32[2,16,256], index: 16, kind: output, shape index: {}]
  %s17 = sld [smem:[#allocation0]]
  $region117: #{tpu_custom_call.1} parent=0
    _
  %s19 = ssub.s32 1, %s17
  %s20 = scalar_select 0, %s19, %s17
  $region1: #{tpu_custom_call.1} parent=0
    #allocation2 [shape = 'u8[16384]{0}', space=vmem, size = 0x4000, scoped, tag = 'input window, operand 2']
    #allocation3 [shape = 's32[2]{0}', space=sflag, size = 0x8, scoped, tag = 'scoped memory for tpu_custom_call.1']
    #allocation4 [shape = 's32[2]{0}', space=sflag, size = 0x8, scoped, tag = 'scoped memory for tpu_custom_call.1']
    #allocation5 [shape = 'u8[4096]{0}', space=vmem, size = 0x1000, scoped, tag = 'input window, operand 3']
    #allocation6 [shape = 's32[2]{0}', space=sflag, size = 0x8, scoped, tag = 'scoped memory for tpu_custom_call.1']
    #allocation7 [shape = 'u8[16384]{0}', space=vmem, size = 0x4000, scoped, tag = 'input window, operand 8, single buffered']
    #allocation8 [shape = 'u8[16384]{0}', space=vmem, size = 0x4000, scoped, tag = 'input window, operand 10, single buffered']
    #allocation9 [shape = 's32[1]{0}', space=sflag, size = 0x4, scoped, tag = 'scoped memory for tpu_custom_call.1']
    #allocation10 [shape = 'u8[16384]{0}', space=vmem, size = 0x4000, scoped, tag = 'input window, operand 12, single buffered']
    #allocation11 [shape = 'u8[16384]{0}', space=vmem, size = 0x4000, scoped, tag = 'output window, operand 0']
    %21 = vsyncpa [#allocation3], 0
    %s22 = scalar_lea.sflag [#allocation3], 1
    %23 = vsyncpa %s22, 0
    %24 = vsyncpa [#allocation6], 0
    %s25 = scalar_lea.sflag [#allocation6], 1
    %26 = vsyncpa %s25, 0
    %27 = vsyncpa [#allocation9], 0
    %28 = vsyncpa [#allocation4], 0
    %s29 = scalar_lea.sflag [#allocation4], 1
    %30 = vsyncpa %s29, 0
    loop: start=0, step=1, limit=6
    $region2: #{tpu_custom_call.1} parent=1 // loop_pre_header
      _
    $region3: #{tpu_custom_call.1} parent=1 // loop_header
      %s32 = sphi 0, %s36
      %p33 = scmp.ge.s32.totalorder %s32, 6
      %s39 = sphi 0, %s51
      %s40 = sphi 0, %s47
      %s41 = sphi 0, %s39
      %s42 = sphi 0, %s40
      %s43 = sphi 0, %s41
      %s44 = sphi 0, %s42
      %s54 = sphi 0, %s56
      %s57 = sphi 0, %s54
      %s58 = sphi 0, %s57
      %s74 = sphi 0, %s58
      %s82 = sphi 0, %s84
      %s85 = sphi 0, %s82
      %s86 = sphi 0, %s85
      %s102 = sphi 0, %s86
      %s110 = sphi 0, %s112
      %s113 = sphi 0, %s110
      %s114 = sphi 0, %s113
      %s130 = sphi 0, %s114
      %s138 = sphi 0, %s140
      %s141 = sphi 0, %s138
      %s142 = sphi 0, %s141
      %s158 = sphi 0, %s142
      %s162 = sphi 0, %s162
      %s164 = sphi 0, %s162
      %s165 = sphi 0, %s164
      %s179 = sphi 0, %s165
      %s183 = sphi 0, %s183
      %s185 = sphi 0, %s183
      %s186 = sphi 0, %s185
      %s200 = sphi 0, %s186
      %s204 = sphi 0, %s204
      %s206 = sphi 0, %s204
      %s207 = sphi 0, %s206
      %s221 = sphi 0, %s207
      %s225 = sphi 0, %s225
      %s227 = sphi 0, %s225
      %s228 = sphi 0, %s227
      %s242 = sphi 0, %s228
      %s246 = sphi 0, %s246
      %s248 = sphi 0, %s246
      %s249 = sphi 0, %s248
      %s263 = sphi 0, %s249
      %s267 = sphi 0, %s267
      %s269 = sphi 0, %s267
      %s270 = sphi 0, %s269
      %s284 = sphi 0, %s270
      %s288 = sphi 0, %s288
      %s290 = sphi 0, %s288
      %s291 = sphi 0, %s290
      %s305 = sphi 0, %s291
      %s309 = sphi 0, %s309
      %s311 = sphi 0, %s309
      %s312 = sphi 0, %s311
      %s326 = sphi 0, %s312
      %s330 = sphi 0, %s330
      %s332 = sphi 0, %s330
      %s333 = sphi 0, %s332
      %s347 = sphi 0, %s333
      %s351 = sphi 0, %s351
      %s353 = sphi 0, %s351
      %s354 = sphi 0, %s353
      %s368 = sphi 0, %s354
      %s372 = sphi 0, %s372
      %s374 = sphi 0, %s372
      %s375 = sphi 0, %s374
      %s389 = sphi 0, %s375
      %s393 = sphi 0, %s393
      %s395 = sphi 0, %s393
      %s396 = sphi 0, %s395
      %s410 = sphi 0, %s396
      %s418 = sphi 0, %s420
      %s421 = sphi 0, %s418
      %s422 = sphi 0, %s421
      %s438 = sphi 0, %s422
    $region4: #{tpu_custom_call.1} parent=1 // loop_header_branch
      %35 = sbr.rel (%p33) target = $region8
    $region5: #{tpu_custom_call.1} parent=1 // loop_body
      %s37 = ssub.s32 %s32, 1
      %s38 = ssub.s32 %s32, 2
      %s45 = sadd.s32 1, %s40
      %p46 = scmp.ge.s32.totalorder %s45, 2
      %s47 = scalar_select %p46, 0, %s45
      %s48 = sadd.s32 1, %s39
      %s49 = scalar_select %p46, %s48, %s39
      %p50 = scmp.ge.s32.totalorder %s49, 2
      %s51 = scalar_select %p50, 0, %s49
      %s52 = ssub.s32 %s39, %s51
      %p53 = scmp.eq.s32.totalorder %s52, 0
      %s55 = sadd.s32 %s54, 1
      %s56 = scalar_select %p53, %s54, %s55
      %p59 = pneg %p53
      %p60 = scmp.eq.s32.totalorder %s32, 3
      %p61 = por %p59, %p60
      %p62 = scmp.ne.s32.totalorder %s54, %s57
      %p63 = scmp.eq.s32.totalorder %s32, 0
      %p64 = por %p62, %p63
      %p65 = scmp.ne.s32.totalorder %s54, %s57
      %p66 = scmp.eq.s32.totalorder %s37, 3
      %p67 = por %p65, %p66
      %p68 = scmp.ne.s32.totalorder %s57, %s58
      %p69 = scmp.eq.s32.totalorder %s37, 0
      %p70 = por %p68, %p69
      %p71 = scmp.ne.s32.totalorder %s57, %s58
      %p72 = scmp.eq.s32.totalorder %s38, 3
      %p73 = por %p71, %p72
      %p75 = scmp.ne.s32.totalorder %s58, %s74
      %p76 = scmp.eq.s32.totalorder %s38, 0
      %p77 = por %p75, %p76
      %s78 = ssub.s32 %s39, %s51
      %s79 = ssub.s32 %s40, %s47
      %s80 = sor.u32 %s78, %s79
      %p81 = scmp.eq.s32.totalorder %s80, 0
      %s83 = sadd.s32 %s82, 1
      %s84 = scalar_select %p81, %s82, %s83
      %p87 = pneg %p81
      %p88 = scmp.eq.s32.totalorder %s32, 3
      %p89 = por %p87, %p88
      %p90 = scmp.ne.s32.totalorder %s82, %s85
      %p91 = scmp.eq.s32.totalorder %s32, 0
      %p92 = por %p90, %p91
      %p93 = scmp.ne.s32.totalorder %s82, %s85
      %p94 = scmp.eq.s32.totalorder %s37, 3
      %p95 = por %p93, %p94
      %p96 = scmp.ne.s32.totalorder %s85, %s86
      %p97 = scmp.eq.s32.totalorder %s37, 0
      %p98 = por %p96, %p97
      %p99 = scmp.ne.s32.totalorder %s85, %s86
      %p100 = scmp.eq.s32.totalorder %s38, 3
      %p101 = por %p99, %p100
      %p103 = scmp.ne.s32.totalorder %s86, %s102
      %p104 = scmp.eq.s32.totalorder %s38, 0
      %p105 = por %p103, %p104
      %s106 = ssub.s32 %s39, %s51
      %s107 = ssub.s32 %s40, %s47
      %s108 = sor.u32 %s106, %s107
      %p109 = scmp.eq.s32.totalorder %s108, 0
      %s111 = sadd.s32 %s110, 1
      %s112 = scalar_select %p109, %s110, %s111
      %p115 = pneg %p109
      %p116 = scmp.eq.s32.totalorder %s32, 3
      %p117 = por %p115, %p116
      %p118 = scmp.ne.s32.totalorder %s110, %s113
      %p119 = scmp.eq.s32.totalorder %s32, 0
      %p120 = por %p118, %p119
      %p121 = scmp.ne.s32.totalorder %s110, %s113
      %p122 = scmp.eq.s32.totalorder %s37, 3
      %p123 = por %p121, %p122
      %p124 = scmp.ne.s32.totalorder %s113, %s114
      %p125 = scmp.eq.s32.totalorder %s37, 0
      %p126 = por %p124, %p125
      %p127 = scmp.ne.s32.totalorder %s113, %s114
      %p128 = scmp.eq.s32.totalorder %s38, 3
      %p129 = por %p127, %p128
      %p131 = scmp.ne.s32.totalorder %s114, %s130
      %p132 = scmp.eq.s32.totalorder %s38, 0
      %p133 = por %p131, %p132
      %s134 = ssub.s32 %s39, %s51
      %s135 = ssub.s32 %s40, %s47
      %s136 = sor.u32 %s134, %s135
      %p137 = scmp.eq.s32.totalorder %s136, 0
      %s139 = sadd.s32 %s138, 1
      %s140 = scalar_select %p137, %s138, %s139
      %p143 = pneg %p137
      %p144 = scmp.eq.s32.totalorder %s32, 3
      %p145 = por %p143, %p144
      %p146 = scmp.ne.s32.totalorder %s138, %s141
      %p147 = scmp.eq.s32.totalorder %s32, 0
      %p148 = por %p146, %p147
      %p149 = scmp.ne.s32.totalorder %s138, %s141
      %p150 = scmp.eq.s32.totalorder %s37, 3
      %p151 = por %p149, %p150
      %p152 = scmp.ne.s32.totalorder %s141, %s142
      %p153 = scmp.eq.s32.totalorder %s37, 0
      %p154 = por %p152, %p153
      %p155 = scmp.ne.s32.totalorder %s141, %s142
      %p156 = scmp.eq.s32.totalorder %s38, 3
      %p157 = por %p155, %p156
      %p159 = scmp.ne.s32.totalorder %s142, %s158
      %p160 = scmp.eq.s32.totalorder %s38, 0
      %p161 = por %p159, %p160
      %s163 = sadd.s32 %s162, 1
      %p166 = scmp.eq.s32.totalorder %s32, 3
      %p167 = scmp.ne.s32.totalorder %s162, %s164
      %p168 = scmp.eq.s32.totalorder %s32, 0
      %p169 = por %p167, %p168
      %p170 = scmp.ne.s32.totalorder %s162, %s164
      %p171 = scmp.eq.s32.totalorder %s37, 3
      %p172 = por %p170, %p171
      %p173 = scmp.ne.s32.totalorder %s164, %s165
      %p174 = scmp.eq.s32.totalorder %s37, 0
      %p175 = por %p173, %p174
      %p176 = scmp.ne.s32.totalorder %s164, %s165
      %p177 = scmp.eq.s32.totalorder %s38, 3
      %p178 = por %p176, %p177
      %p180 = scmp.ne.s32.totalorder %s165, %s179
      %p181 = scmp.eq.s32.totalorder %s38, 0
      %p182 = por %p180, %p181
      %s184 = sadd.s32 %s183, 1
      %p187 = scmp.eq.s32.totalorder %s32, 3
      %p188 = scmp.ne.s32.totalorder %s183, %s185
      %p189 = scmp.eq.s32.totalorder %s32, 0
      %p190 = por %p188, %p189
      %p191 = scmp.ne.s32.totalorder %s183, %s185
      %p192 = scmp.eq.s32.totalorder %s37, 3
      %p193 = por %p191, %p192
      %p194 = scmp.ne.s32.totalorder %s185, %s186
      %p195 = scmp.eq.s32.totalorder %s37, 0
      %p196 = por %p194, %p195
      %p197 = scmp.ne.s32.totalorder %s185, %s186
      %p198 = scmp.eq.s32.totalorder %s38, 3
      %p199 = por %p197, %p198
      %p201 = scmp.ne.s32.totalorder %s186, %s200
      %p202 = scmp.eq.s32.totalorder %s38, 0
      %p203 = por %p201, %p202
      %s205 = sadd.s32 %s204, 1
      %p208 = scmp.eq.s32.totalorder %s32, 3
      %p209 = scmp.ne.s32.totalorder %s204, %s206
      %p210 = scmp.eq.s32.totalorder %s32, 0
      %p211 = por %p209, %p210
      %p212 = scmp.ne.s32.totalorder %s204, %s206
      %p213 = scmp.eq.s32.totalorder %s37, 3
      %p214 = por %p212, %p213
      %p215 = scmp.ne.s32.totalorder %s206, %s207
      %p216 = scmp.eq.s32.totalorder %s37, 0
      %p217 = por %p215, %p216
      %p218 = scmp.ne.s32.totalorder %s206, %s207
      %p219 = scmp.eq.s32.totalorder %s38, 3
      %p220 = por %p218, %p219
      %p222 = scmp.ne.s32.totalorder %s207, %s221
      %p223 = scmp.eq.s32.totalorder %s38, 0
      %p224 = por %p222, %p223
      %s226 = sadd.s32 %s225, 1
      %p229 = scmp.eq.s32.totalorder %s32, 3
      %p230 = scmp.ne.s32.totalorder %s225, %s227
      %p231 = scmp.eq.s32.totalorder %s32, 0
      %p232 = por %p230, %p231
      %p233 = scmp.ne.s32.totalorder %s225, %s227
      %p234 = scmp.eq.s32.totalorder %s37, 3
      %p235 = por %p233, %p234
      %p236 = scmp.ne.s32.totalorder %s227, %s228
      %p237 = scmp.eq.s32.totalorder %s37, 0
      %p238 = por %p236, %p237
      %p239 = scmp.ne.s32.totalorder %s227, %s228
      %p240 = scmp.eq.s32.totalorder %s38, 3
      %p241 = por %p239, %p240
      %p243 = scmp.ne.s32.totalorder %s228, %s242
      %p244 = scmp.eq.s32.totalorder %s38, 0
      %p245 = por %p243, %p244
      %s247 = sadd.s32 %s246, 1
      %p250 = scmp.eq.s32.totalorder %s32, 3
      %p251 = scmp.ne.s32.totalorder %s246, %s248
      %p252 = scmp.eq.s32.totalorder %s32, 0
      %p253 = por %p251, %p252
      %p254 = scmp.ne.s32.totalorder %s246, %s248
      %p255 = scmp.eq.s32.totalorder %s37, 3
      %p256 = por %p254, %p255
      %p257 = scmp.ne.s32.totalorder %s248, %s249
      %p258 = scmp.eq.s32.totalorder %s37, 0
      %p259 = por %p257, %p258
      %p260 = scmp.ne.s32.totalorder %s248, %s249
      %p261 = scmp.eq.s32.totalorder %s38, 3
      %p262 = por %p260, %p261
      %p264 = scmp.ne.s32.totalorder %s249, %s263
      %p265 = scmp.eq.s32.totalorder %s38, 0
      %p266 = por %p264, %p265
      %s268 = sadd.s32 %s267, 1
      %p271 = scmp.eq.s32.totalorder %s32, 3
      %p272 = scmp.ne.s32.totalorder %s267, %s269
      %p273 = scmp.eq.s32.totalorder %s32, 0
      %p274 = por %p272, %p273
      %p275 = scmp.ne.s32.totalorder %s267, %s269
      %p276 = scmp.eq.s32.totalorder %s37, 3
      %p277 = por %p275, %p276
      %p278 = scmp.ne.s32.totalorder %s269, %s270
      %p279 = scmp.eq.s32.totalorder %s37, 0
      %p280 = por %p278, %p279
      %p281 = scmp.ne.s32.totalorder %s269, %s270
      %p282 = scmp.eq.s32.totalorder %s38, 3
      %p283 = por %p281, %p282
      %p285 = scmp.ne.s32.totalorder %s270, %s284
      %p286 = scmp.eq.s32.totalorder %s38, 0
      %p287 = por %p285, %p286
      %s289 = sadd.s32 %s288, 1
      %p292 = scmp.eq.s32.totalorder %s32, 3
      %p293 = scmp.ne.s32.totalorder %s288, %s290
      %p294 = scmp.eq.s32.totalorder %s32, 0
      %p295 = por %p293, %p294
      %p296 = scmp.ne.s32.totalorder %s288, %s290
      %p297 = scmp.eq.s32.totalorder %s37, 3
      %p298 = por %p296, %p297
      %p299 = scmp.ne.s32.totalorder %s290, %s291
      %p300 = scmp.eq.s32.totalorder %s37, 0
      %p301 = por %p299, %p300
      %p302 = scmp.ne.s32.totalorder %s290, %s291
      %p303 = scmp.eq.s32.totalorder %s38, 3
      %p304 = por %p302, %p303
      %p306 = scmp.ne.s32.totalorder %s291, %s305
      %p307 = scmp.eq.s32.totalorder %s38, 0
      %p308 = por %p306, %p307
      %s310 = sadd.s32 %s309, 1
      %p313 = scmp.eq.s32.totalorder %s32, 3
      %p314 = scmp.ne.s32.totalorder %s309, %s311
      %p315 = scmp.eq.s32.totalorder %s32, 0
      %p316 = por %p314, %p315
      %p317 = scmp.ne.s32.totalorder %s309, %s311
      %p318 = scmp.eq.s32.totalorder %s37, 3
      %p319 = por %p317, %p318
      %p320 = scmp.ne.s32.totalorder %s311, %s312
      %p321 = scmp.eq.s32.totalorder %s37, 0
      %p322 = por %p320, %p321
      %p323 = scmp.ne.s32.totalorder %s311, %s312
      %p324 = scmp.eq.s32.totalorder %s38, 3
      %p325 = por %p323, %p324
      %p327 = scmp.ne.s32.totalorder %s312, %s326
      %p328 = scmp.eq.s32.totalorder %s38, 0
      %p329 = por %p327, %p328
      %s331 = sadd.s32 %s330, 1
      %p334 = scmp.eq.s32.totalorder %s32, 3
      %p335 = scmp.ne.s32.totalorder %s330, %s332
      %p336 = scmp.eq.s32.totalorder %s32, 0
      %p337 = por %p335, %p336
      %p338 = scmp.ne.s32.totalorder %s330, %s332
      %p339 = scmp.eq.s32.totalorder %s37, 3
      %p340 = por %p338, %p339
      %p341 = scmp.ne.s32.totalorder %s332, %s333
      %p342 = scmp.eq.s32.totalorder %s37, 0
      %p343 = por %p341, %p342
      %p344 = scmp.ne.s32.totalorder %s332, %s333
      %p345 = scmp.eq.s32.totalorder %s38, 3
      %p346 = por %p344, %p345
      %p348 = scmp.ne.s32.totalorder %s333, %s347
      %p349 = scmp.eq.s32.totalorder %s38, 0
      %p350 = por %p348, %p349
      %s352 = sadd.s32 %s351, 1
      %p355 = scmp.eq.s32.totalorder %s32, 3
      %p356 = scmp.ne.s32.totalorder %s351, %s353
      %p357 = scmp.eq.s32.totalorder %s32, 0
      %p358 = por %p356, %p357
      %p359 = scmp.ne.s32.totalorder %s351, %s353
      %p360 = scmp.eq.s32.totalorder %s37, 3
      %p361 = por %p359, %p360
      %p362 = scmp.ne.s32.totalorder %s353, %s354
      %p363 = scmp.eq.s32.totalorder %s37, 0
      %p364 = por %p362, %p363
      %p365 = scmp.ne.s32.totalorder %s353, %s354
      %p366 = scmp.eq.s32.totalorder %s38, 3
      %p367 = por %p365, %p366
      %p369 = scmp.ne.s32.totalorder %s354, %s368
      %p370 = scmp.eq.s32.totalorder %s38, 0
      %p371 = por %p369, %p370
      %s373 = sadd.s32 %s372, 1
      %p376 = scmp.eq.s32.totalorder %s32, 3
      %p377 = scmp.ne.s32.totalorder %s372, %s374
      %p378 = scmp.eq.s32.totalorder %s32, 0
      %p379 = por %p377, %p378
      %p380 = scmp.ne.s32.totalorder %s372, %s374
      %p381 = scmp.eq.s32.totalorder %s37, 3
      %p382 = por %p380, %p381
      %p383 = scmp.ne.s32.totalorder %s374, %s375
      %p384 = scmp.eq.s32.totalorder %s37, 0
      %p385 = por %p383, %p384
      %p386 = scmp.ne.s32.totalorder %s374, %s375
      %p387 = scmp.eq.s32.totalorder %s38, 3
      %p388 = por %p386, %p387
      %p390 = scmp.ne.s32.totalorder %s375, %s389
      %p391 = scmp.eq.s32.totalorder %s38, 0
      %p392 = por %p390, %p391
      %s394 = sadd.s32 %s393, 1
      %p397 = scmp.eq.s32.totalorder %s32, 3
      %p398 = scmp.ne.s32.totalorder %s393, %s395
      %p399 = scmp.eq.s32.totalorder %s32, 0
      %p400 = por %p398, %p399
      %p401 = scmp.ne.s32.totalorder %s393, %s395
      %p402 = scmp.eq.s32.totalorder %s37, 3
      %p403 = por %p401, %p402
      %p404 = scmp.ne.s32.totalorder %s395, %s396
      %p405 = scmp.eq.s32.totalorder %s37, 0
      %p406 = por %p404, %p405
      %p407 = scmp.ne.s32.totalorder %s395, %s396
      %p408 = scmp.eq.s32.totalorder %s38, 3
      %p409 = por %p407, %p408
      %p411 = scmp.ne.s32.totalorder %s396, %s410
      %p412 = scmp.eq.s32.totalorder %s38, 0
      %p413 = por %p411, %p412
      %s414 = ssub.s32 %s39, %s51
      %s415 = ssub.s32 %s40, %s47
      %s416 = sor.u32 %s414, %s415
      %p417 = scmp.eq.s32.totalorder %s416, 0
      %s419 = sadd.s32 %s418, 1
      %s420 = scalar_select %p417, %s418, %s419
      %p423 = pneg %p417
      %p424 = scmp.eq.s32.totalorder %s32, 3
      %p425 = por %p423, %p424
      %p426 = scmp.ne.s32.totalorder %s418, %s421
      %p427 = scmp.eq.s32.totalorder %s32, 0
      %p428 = por %p426, %p427
      %p429 = scmp.ne.s32.totalorder %s418, %s421
      %p430 = scmp.eq.s32.totalorder %s37, 3
      %p431 = por %p429, %p430
      %p432 = scmp.ne.s32.totalorder %s421, %s422
      %p433 = scmp.eq.s32.totalorder %s37, 0
      %p434 = por %p432, %p433
      %p435 = scmp.ne.s32.totalorder %s421, %s422
      %p436 = scmp.eq.s32.totalorder %s38, 3
      %p437 = por %p435, %p436
      %p439 = scmp.ne.s32.totalorder %s422, %s438
      %p440 = scmp.eq.s32.totalorder %s38, 0
      %p441 = por %p439, %p440
      %p442 = scmp.le.s32.totalorder 1, %s32
      %p443 = scmp.lt.s32.totalorder %s32, 5
      %p444 = pnand %p442, %p443
      %p445 = pneg %p444
      // Predicated region
      $region9: #{tpu_custom_call.1} parent=5 // pred_check
        _
      $region10: #{tpu_custom_call.1} parent=5 // pred_check_branch
        %447 = sbr.rel (%p444) target = $region12
      $region11: #{tpu_custom_call.1} parent=5 // pred_region
        %s448 = ssub.s32 %s32, 1
        // Predicated region
        $region13: #{tpu_custom_call.1} parent=11 // pred_check
          %p449 = pneg %p175
        $region14: #{tpu_custom_call.1} parent=11 // pred_check_branch
          %451 = sbr.rel (%p449) target = $region16
        $region15: #{tpu_custom_call.1} parent=11 // pred_region
          _
        $region16: #{tpu_custom_call.1} parent=11 // pred_fallthru
          _
        // Predicated region
        $region17: #{tpu_custom_call.1} parent=11 // pred_check
          %p452 = pneg %p196
        $region18: #{tpu_custom_call.1} parent=11 // pred_check_branch
          %454 = sbr.rel (%p452) target = $region20
        $region19: #{tpu_custom_call.1} parent=11 // pred_region
          _
        $region20: #{tpu_custom_call.1} parent=11 // pred_fallthru
          _
        // Predicated region
        $region21: #{tpu_custom_call.1} parent=11 // pred_check
          %p455 = pneg %p217
        $region22: #{tpu_custom_call.1} parent=11 // pred_check_branch
          %457 = sbr.rel (%p455) target = $region24
        $region23: #{tpu_custom_call.1} parent=11 // pred_region
          _
        $region24: #{tpu_custom_call.1} parent=11 // pred_fallthru
          _
        // Predicated region
        $region25: #{tpu_custom_call.1} parent=11 // pred_check
          %p458 = pneg %p238
        $region26: #{tpu_custom_call.1} parent=11 // pred_check_branch
          %460 = sbr.rel (%p458) target = $region28
        $region27: #{tpu_custom_call.1} parent=11 // pred_region
          _
        $region28: #{tpu_custom_call.1} parent=11 // pred_fallthru
          _
        // Predicated region
        $region29: #{tpu_custom_call.1} parent=11 // pred_check
          %p461 = pneg %p259
        $region30: #{tpu_custom_call.1} parent=11 // pred_check_branch
          %463 = sbr.rel (%p461) target = $region32
        $region31: #{tpu_custom_call.1} parent=11 // pred_region
          %s465 = ssub.s32 512, 512
          %466 = vsyncadd [#allocation6], %s465
          %s467 = sshll.u32 [#allocation7], 4
          %s468 = int_to_ptr.vmem [resolvable:$true] %s467
          %473 = dma.hbm_to_vmem [thread:$0]  %s8, 512, %s468, [#allocation6], 128, 128, 8
        $region32: #{tpu_custom_call.1} parent=11 // pred_fallthru
          _
        // Predicated region
        $region33: #{tpu_custom_call.1} parent=11 // pred_check
          %p474 = pneg %p280
        $region34: #{tpu_custom_call.1} parent=11 // pred_check_branch
          %476 = sbr.rel (%p474) target = $region36
        $region35: #{tpu_custom_call.1} parent=11 // pred_region
          _
        $region36: #{tpu_custom_call.1} parent=11 // pred_fallthru
          _
        // Predicated region
        $region37: #{tpu_custom_call.1} parent=11 // pred_check
          %p477 = pneg %p301
        $region38: #{tpu_custom_call.1} parent=11 // pred_check_branch
          %479 = sbr.rel (%p477) target = $region40
        $region39: #{tpu_custom_call.1} parent=11 // pred_region
          %s481 = ssub.s32 512, 512
          %482 = vsyncadd [#allocation9], %s481
          %s483 = sshll.u32 [#allocation8], 4
          %s484 = int_to_ptr.vmem [resolvable:$true] %s483
          %489 = dma.hbm_to_vmem [thread:$0]  %s10, 512, %s484, [#allocation9], 128, 128, 8
        $region40: #{tpu_custom_call.1} parent=11 // pred_fallthru
          _
        // Predicated region
        $region41: #{tpu_custom_call.1} parent=11 // pred_check
          %p490 = pneg %p322
        $region42: #{tpu_custom_call.1} parent=11 // pred_check_branch
          %492 = sbr.rel (%p490) target = $region44
        $region43: #{tpu_custom_call.1} parent=11 // pred_region
          _
        $region44: #{tpu_custom_call.1} parent=11 // pred_fallthru
          _
        // Predicated region
        $region45: #{tpu_custom_call.1} parent=11 // pred_check
          %p493 = pneg %p343
        $region46: #{tpu_custom_call.1} parent=11 // pred_check_branch
          %495 = sbr.rel (%p493) target = $region48
        $region47: #{tpu_custom_call.1} parent=11 // pred_region
          %s497 = ssub.s32 512, 512
          %498 = vsyncadd [#allocation9], %s497
          %s499 = sshll.u32 [#allocation10], 4
          %s500 = int_to_ptr.vmem [resolvable:$true] %s499
          %505 = dma.hbm_to_vmem [thread:$0]  %s12, 512, %s500, [#allocation9], 128, 128, 8
        $region48: #{tpu_custom_call.1} parent=11 // pred_fallthru
          _
        // Predicated region
        $region49: #{tpu_custom_call.1} parent=11 // pred_check
          %p506 = pneg %p364
        $region50: #{tpu_custom_call.1} parent=11 // pred_check_branch
          %508 = sbr.rel (%p506) target = $region52
        $region51: #{tpu_custom_call.1} parent=11 // pred_region
          _
        $region52: #{tpu_custom_call.1} parent=11 // pred_fallthru
          _
        // Predicated region
        $region53: #{tpu_custom_call.1} parent=11 // pred_check
          %p509 = pneg %p385
        $region54: #{tpu_custom_call.1} parent=11 // pred_check_branch
          %511 = sbr.rel (%p509) target = $region56
        $region55: #{tpu_custom_call.1} parent=11 // pred_region
          _
        $region56: #{tpu_custom_call.1} parent=11 // pred_fallthru
          _
        // Predicated region
        $region57: #{tpu_custom_call.1} parent=11 // pred_check
          %p512 = pneg %p406
        $region58: #{tpu_custom_call.1} parent=11 // pred_check_branch
          %514 = sbr.rel (%p512) target = $region60
        $region59: #{tpu_custom_call.1} parent=11 // pred_region
          _
        $region60: #{tpu_custom_call.1} parent=11 // pred_fallthru
          _
      $region12: #{tpu_custom_call.1} parent=5 // pred_fallthru
        _
      %p515 = scmp.lt.s32.totalorder %s32, 4
      // Predicated region
      $region61: #{tpu_custom_call.1} parent=5 // pred_check
        %p516 = pneg %p515
      $region62: #{tpu_custom_call.1} parent=5 // pred_check_branch
        %518 = sbr.rel (%p516) target = $region64
      $region63: #{tpu_custom_call.1} parent=5 // pred_region
        // Predicated region
        $region65: #{tpu_custom_call.1} parent=63 // pred_check
          %p519 = pneg %p64
        $region66: #{tpu_custom_call.1} parent=63 // pred_check_branch
          %521 = sbr.rel (%p519) target = $region68
        $region67: #{tpu_custom_call.1} parent=63 // pred_region
          %p522 = scmp.lt.s32.totalorder %s39, 1
          %s523 = scalar_select %p522, %s39, 1
          %s524 = smul.addr %s523, 18
          %s525 = smul.addr %s524, 8
          %s526 = scalar_lea.vmem %s0, %s525
        $region68: #{tpu_custom_call.1} parent=63 // pred_fallthru
          _
        // Predicated region
        $region69: #{tpu_custom_call.1} parent=63 // pred_check
          %p527 = pneg %p92
        $region70: #{tpu_custom_call.1} parent=63 // pred_check_branch
          %529 = sbr.rel (%p527) target = $region72
        $region71: #{tpu_custom_call.1} parent=63 // pred_region
          %p530 = scmp.lt.s32.totalorder %s39, 1
          %s531 = scalar_select %p530, %s39, 1
          %p532 = scmp.lt.s32.totalorder %s40, 1
          %s533 = scalar_select %p532, %s40, 1
          %s534 = smul.addr %s531, 2
          %s535 = sadd.s32 %s533, %s534
          %s536 = smul.addr %s535, 4
          %s537 = scalar_lea.vmem %s1, %s536
        $region72: #{tpu_custom_call.1} parent=63 // pred_fallthru
          _
        // Predicated region
        $region73: #{tpu_custom_call.1} parent=63 // pred_check
          %p538 = pneg %p120
        $region74: #{tpu_custom_call.1} parent=63 // pred_check_branch
          %540 = sbr.rel (%p538) target = $region76
        $region75: #{tpu_custom_call.1} parent=63 // pred_region
          %s541 = sand.u32 %s110, 1
          %s542 = scalar_lea.sflag [#allocation3], %s541
          %s543 = sand.u32 %s110, 1
          %s544 = smul.addr %s543, 16
          %s545 = scalar_lea.vmem [#allocation2], %s544
          %s547 = ssub.s32 256, 256
          %548 = vsyncadd %s542, %s547
          %s549 = smul.addr %s39, 4
          %s550 = sadd.s32 %s40, %s549
          %s551 = smul.addr %s550, 128
          %s552 = scalar_lea.hbm %s2, %s551
          %s553 = sshll.u32 %s545, 4
          %s554 = int_to_ptr.vmem [resolvable:$true] %s553
          %559 = dma.hbm_to_vmem [thread:$0]  %s552, 256, %s554, %s542, 256, 128, 8
        $region76: #{tpu_custom_call.1} parent=63 // pred_fallthru
          _
        // Predicated region
        $region77: #{tpu_custom_call.1} parent=63 // pred_check
          %p560 = pneg %p148
        $region78: #{tpu_custom_call.1} parent=63 // pred_check_branch
          %562 = sbr.rel (%p560) target = $region80
        $region79: #{tpu_custom_call.1} parent=63 // pred_region
          %s563 = sand.u32 %s32, 1
          %s564 = scalar_lea.sflag [#allocation6], %s563
          %s565 = sand.u32 %s138, 1
          %s566 = smul.addr %s565, 4
          %s567 = scalar_lea.vmem [#allocation5], %s566
          %s569 = ssub.s32 64, 64
          %570 = vsyncadd %s564, %s569
          %s571 = smul.addr %s39, 2
          %s572 = sadd.s32 %s40, %s571
          %s573 = smul.addr %s572, 64
          %s574 = scalar_lea.hbm %s3, %s573
          %s576 = sshll.u32 %s567, 4
          %s577 = int_to_ptr.vmem [resolvable:$true] %s576
          %579 = dma.hbm_to_vmem [thread:$0]  %s574, 64, %s577, %s564
        $region80: #{tpu_custom_call.1} parent=63 // pred_fallthru
          _
      $region64: #{tpu_custom_call.1} parent=5 // pred_fallthru
        _
      %p580 = scmp.le.s32.totalorder 1, %s32
      %p581 = scmp.lt.s32.totalorder %s32, 5
      %p582 = pnand %p580, %p581
      %p583 = pneg %p582
      // Predicated region
      $region81: #{tpu_custom_call.1} parent=5 // pred_check
        _
      $region82: #{tpu_custom_call.1} parent=5 // pred_check_branch
        %585 = sbr.rel (%p582) target = $region84
      $region83: #{tpu_custom_call.1} parent=5 // pred_region
        %s586 = ssub.s32 %s32, 1
        %s587 = sand.u32 %s113, 1
        %s588 = scalar_lea.sflag [#allocation3], %s587
        %s589 = sand.u32 %s113, 1
        %s590 = smul.addr %s589, 16
        %s591 = scalar_lea.vmem [#allocation2], %s590
        // Predicated region
        $region85: #{tpu_custom_call.1} parent=83 // pred_check
          %p592 = pneg %p126
        $region86: #{tpu_custom_call.1} parent=83 // pred_check_branch
          %594 = sbr.rel (%p592) target = $region88
        $region87: #{tpu_custom_call.1} parent=83 // pred_region
          %595 = dma.done %s588, 256
        $region88: #{tpu_custom_call.1} parent=83 // pred_fallthru
          _
        %s596 = sand.u32 %s37, 1
        %s597 = scalar_lea.sflag [#allocation6], %s596
        %s598 = sand.u32 %s141, 1
        %s599 = smul.addr %s598, 4
        %s600 = scalar_lea.vmem [#allocation5], %s599
        // Predicated region
        $region89: #{tpu_custom_call.1} parent=83 // pred_check
          %p601 = pneg %p154
        $region90: #{tpu_custom_call.1} parent=83 // pred_check_branch
          %603 = sbr.rel (%p601) target = $region92
        $region91: #{tpu_custom_call.1} parent=83 // pred_region
          %604 = dma.done %s597, 64
        $region92: #{tpu_custom_call.1} parent=83 // pred_fallthru
          _
        // Predicated region
        $region93: #{tpu_custom_call.1} parent=83 // pred_check
          %p605 = pneg %p259
        $region94: #{tpu_custom_call.1} parent=83 // pred_check_branch
          %607 = sbr.rel (%p605) target = $region96
        $region95: #{tpu_custom_call.1} parent=83 // pred_region
          %608 = dma.done [#allocation6], 512
        $region96: #{tpu_custom_call.1} parent=83 // pred_fallthru
          _
        // Predicated region
        $region97: #{tpu_custom_call.1} parent=83 // pred_check
          %p609 = pneg %p301
        $region98: #{tpu_custom_call.1} parent=83 // pred_check_branch
          %611 = sbr.rel (%p609) target = $region100
        $region99: #{tpu_custom_call.1} parent=83 // pred_region
          %612 = dma.done [#allocation9], 512
        $region100: #{tpu_custom_call.1} parent=83 // pred_fallthru
          _
        // Predicated region
        $region101: #{tpu_custom_call.1} parent=83 // pred_check
          %p613 = pneg %p343
        $region102: #{tpu_custom_call.1} parent=83 // pred_check_branch
          %615 = sbr.rel (%p613) target = $region104
        $region103: #{tpu_custom_call.1} parent=83 // pred_region
          %616 = dma.done [#allocation9], 512
        $region104: #{tpu_custom_call.1} parent=83 // pred_fallthru
          _
        %p617 = scmp.lt.s32.totalorder %s41, 1
        %s618 = scalar_select %p617, %s41, 1
        %s619 = smul.addr %s618, 18
        %s620 = smul.addr %s619, 8
        %s621 = scalar_lea.vmem %s0, %s620
        %p622 = pneg %p70
        %p623 = pneg %p67
        %p624 = scmp.lt.s32.totalorder %s41, 1
        %s625 = scalar_select %p624, %s41, 1
        %p626 = scmp.lt.s32.totalorder %s42, 1
        %s627 = scalar_select %p626, %s42, 1
        %s628 = smul.addr %s625, 2
        %s629 = sadd.s32 %s627, %s628
        %s630 = smul.addr %s629, 4
        %s631 = scalar_lea.vmem %s1, %s630
        %p632 = pneg %p98
        %p633 = pneg %p95
        %s634 = sand.u32 %s113, 1
        %s635 = scalar_lea.sflag [#allocation3], %s634
        %s636 = sand.u32 %s113, 1
        %s637 = smul.addr %s636, 16
        %s638 = scalar_lea.vmem [#allocation2], %s637
        %p639 = pneg %p126
        %p640 = pneg %p123
        %s641 = sand.u32 %s37, 1
        %s642 = scalar_lea.sflag [#allocation6], %s641
        %s643 = sand.u32 %s141, 1
        %s644 = smul.addr %s643, 4
        %s645 = scalar_lea.vmem [#allocation5], %s644
        %p646 = pneg %p154
        %p647 = pneg %p151
        %p648 = pneg %p175
        %p649 = pneg %p172
        %p650 = pneg %p196
        %p651 = pneg %p193
        %p652 = pneg %p217
        %p653 = pneg %p214
        %p654 = pneg %p238
        %p655 = pneg %p235
        %p656 = pneg %p259
        %p657 = pneg %p256
        %p658 = pneg %p280
        %p659 = pneg %p277
        %p660 = pneg %p301
        %p661 = pneg %p298
        %p662 = pneg %p322
        %p663 = pneg %p319
        %p664 = pneg %p343
        %p665 = pneg %p340
        %p666 = pneg %p364
        %p667 = pneg %p361
        %p668 = pneg %p385
        %p669 = pneg %p382
        %p670 = pneg %p406
        %p671 = pneg %p403
        %p672 = pneg %p434
        %p673 = pneg %p431
        %s674 = sand.u32 %s421, 1
        %s675 = scalar_lea.sflag [#allocation4], %s674
        %s676 = sand.u32 %s421, 1
        %s677 = smul.addr %s676, 16
        %s678 = scalar_lea.vmem [#allocation11], %s677
        %p679 = scmp.lt.s32.totalorder %s41, 1
        %s680 = scalar_select %p679, %s41, 1
        %s681 = smul.addr %s680, 18
        %s682 = smul.addr %s681, 8
        %s683 = scalar_lea.vmem %s0, %s682
        %p684 = scmp.lt.s32.totalorder %s41, 1
        %s685 = scalar_select %p684, %s41, 1
        %p686 = scmp.lt.s32.totalorder %s42, 1
        %s687 = scalar_select %p686, %s42, 1
        %s688 = smul.addr %s685, 2
        %s689 = sadd.s32 %s687, %s688
        %s690 = smul.addr %s689, 4
        %s691 = scalar_lea.vmem %s1, %s690
        %v692 = vld [vmem:[%s591] sm:$0xff]
        %v693 = vld [vmem:[%s591 + $0x8] sm:$0xff]
        %v694 = vld [vmem:[%s4] sm:$0xff]
        %v695 = vld [vmem:[%s4 + $0x8] sm:$0xff]
        %v696 = vld [vmem:[%s4 + $0x10] sm:$0xff]
        %v697 = vld [vmem:[%s4 + $0x18] sm:$0xff]
        %v698 = vld [vmem:[%s5] sm:$0xff]
        %v699 = vld [vmem:[%s5 + $0x8] sm:$0xff]
        %v700 = vld [vmem:[%s5 + $0x10] sm:$0xff]
        %v701 = vld [vmem:[%s5 + $0x18] sm:$0xff]
        %703 = vset.pattern.permute.xlu0 0
        %704 = vperm.xlu0 %703, %v698
        %v705 = vpop.permute.xlu0 %704
        %708 = vset.pattern.permute.xlu0 0
        %709 = vperm.xlu0 %708, %v699
        %v710 = vpop.permute.xlu0 %709
        %713 = vset.pattern.permute.xlu0 0
        %714 = vperm.xlu0 %713, %v700
        %v715 = vpop.permute.xlu0 %714
        %718 = vset.pattern.permute.xlu0 0
        %719 = vperm.xlu0 %718, %v701
        %v720 = vpop.permute.xlu0 %719
        %vm722 = vcmask 130048
        %v724 = vsel %vm722, %v694, 0
        %v727 = vsel %vm722, %v695, 0
        %v730 = vsel %vm722, %v696, 0
        %v733 = vsel %vm722, %v697, 0
        %735 = vmatprep.subr.mxu0 0.0
        %736 = vmatpush1.msra.mxu0 0.0
        %737 = vmatprep.subr.mxu0 0.0
        %738 = vmatpush1.msra.mxu0 0.0
        %739 = vmatprep.subr.mxu0 0.0
        %740 = vmatpush1.msra.mxu0 0.0
        %741 = vmatprep.subr.mxu0 0.0
        %742 = vmatpush1.msra.mxu0 0.0
        %743 = vmatprep.subr.mxu0 0.0
        %744 = vmatpush1.msra.mxu0 0.0
        %745 = vmatprep.subr.mxu0 0.0
        %746 = vmatpush1.msra.mxu0 0.0
        %747 = vmatprep.subr.mxu0 0.0
        %748 = vmatpush1.msra.mxu0 0.0
        %749 = vmatprep.subr.mxu0 0.0
        %750 = vmatpush1.msra.mxu0 0.0
        %751 = vmatprep.subr.mxu0 0.0
        %752 = vmatpush1.msra.mxu0 0.0
        %753 = vmatprep.subr.mxu0 0.0
        %754 = vmatpush1.msra.mxu0 0.0
        %755 = vmatprep.subr.mxu0 0.0
        %756 = vmatpush1.msra.mxu0 0.0
        %757 = vmatprep.subr.mxu0 0.0
        %758 = vmatpush1.msra.mxu0 0.0
        %759 = vmatprep.subr.mxu0 0.0
        %760 = vmatpush1.msra.mxu0 0.0
        %761 = vmatprep.subr.mxu0 0.0
        %762 = vmatpush1.msra.mxu0 0.0
        %763 = vmatprep.subr.mxu0 0.0
        %764 = vmatpush1.msra.mxu0 %v693
        %765 = vmatprep.subr.mxu0 0.0
        %766 = vmatpush1.msra.mxu0 %v692
        %767 = vmatprep.subr.mxu0 0.0
        %768 = vmatpush2.msra.mxu0 0.0
        %769 = vmatprep.subr.mxu0 0.0
        %770 = vmatpush2.msra.mxu0 0.0
        %771 = vmatprep.subr.mxu0 0.0
        %772 = vmatpush2.msra.mxu0 0.0
        %773 = vmatprep.subr.mxu0 0.0
        %774 = vmatpush2.msra.mxu0 0.0
        %775 = vmatprep.subr.mxu0 0.0
        %776 = vmatpush2.msra.mxu0 0.0
        %777 = vmatprep.subr.mxu0 0.0
        %778 = vmatpush2.msra.mxu0 0.0
        %779 = vmatprep.subr.mxu0 0.0
        %780 = vmatpush2.msra.mxu0 0.0
        %781 = vmatprep.subr.mxu0 0.0
        %782 = vmatpush2.msra.mxu0 0.0
        %783 = vmatprep.subr.mxu0 0.0
        %784 = vmatpush2.msra.mxu0 0.0
        %785 = vmatprep.subr.mxu0 0.0
        %786 = vmatpush2.msra.mxu0 0.0
        %787 = vmatprep.subr.mxu0 0.0
        %788 = vmatpush2.msra.mxu0 0.0
        %789 = vmatprep.subr.mxu0 0.0
        %790 = vmatpush2.msra.mxu0 0.0
        %791 = vmatprep.subr.mxu0 0.0
        %792 = vmatpush2.msra.mxu0 0.0
        %793 = vmatprep.subr.mxu0 0.0
        %794 = vmatpush2.msra.mxu0 0.0
        %795 = vmatprep.subr.mxu0 0.0
        %796 = vmatpush2.msra.mxu0 0.0
        %797 = vmatprep.subr.mxu0 0.0
        %798 = vmatpush2.msra.mxu0 0.0
        %799 = vmatprep.mubr.f32.mxu0 0.0
        %800 = vmatmul.mubr.f32.gmra.mxu0 %v724
        %v801 = vpop.f32.mrf.mxu0
        %v802 = vadd.f32 %v705, %v801
        %v803 = vpop.f32.mrf.mxu0
        %804 = vmatprep.mubr.f32.mxu0 0.0
        %805 = vmatmul.mubr.f32.gmra.mxu0 %v727
        %v806 = vpop.f32.mrf.mxu0
        %v807 = vadd.f32 %v710, %v806
        %v808 = vpop.f32.mrf.mxu0
        %809 = vmatprep.mubr.f32.mxu0 0.0
        %810 = vmatmul.mubr.f32.gmra.mxu0 %v730
        %v811 = vpop.f32.mrf.mxu0
        %v812 = vadd.f32 %v715, %v811
        %v813 = vpop.f32.mrf.mxu0
        %814 = vmatprep.mubr.f32.mxu0 0.0
        %815 = vmatmul.mubr.f32.gmra.mxu0 %v733
        %v816 = vpop.f32.mrf.mxu0
        %v817 = vadd.f32 %v720, %v816
        %v818 = vpop.f32.mrf.mxu0
        %819 = vdwg.mxu0
        %v820 = vlaneseq
        %v821 = vshrl.u32 %v820, 7
        %v822 = vadd.s32 %v821, 8
        %v823 = vadd.s32 %v821, 16
        %v824 = vadd.s32 %v821, 24
        %v825 = vadd.s32 %v821, 32
        %v826 = vadd.s32 %v821, 40
        %v827 = vadd.s32 %v821, 48
        %v828 = vadd.s32 %v821, 56
        %v829 = vadd.s32 %v821, 64
        %v830 = vadd.s32 %v821, 72
        %v831 = vadd.s32 %v821, 80
        %v832 = vadd.s32 %v821, 88
        %v833 = vadd.s32 %v821, 96
        %v834 = vadd.s32 %v821, 104
        %v835 = vadd.s32 %v821, 112
        %v836 = vadd.s32 %v821, 120
        %v837 = vadd.s32 %v821, 128
        %v838 = vadd.s32 %v821, 136
        %v839 = vadd.s32 %v821, 144
        %v840 = vadd.s32 %v821, 152
        %v841 = vadd.s32 %v821, 160
        %v842 = vadd.s32 %v821, 168
        %v843 = vadd.s32 %v821, 176
        %v844 = vadd.s32 %v821, 184
        %v845 = vadd.s32 %v821, 192
        %v846 = vadd.s32 %v821, 200
        %v847 = vadd.s32 %v821, 208
        %v848 = vadd.s32 %v821, 216
        %v849 = vadd.s32 %v821, 224
        %v850 = vadd.s32 %v821, 232
        %v851 = vadd.s32 %v821, 240
        %v852 = vadd.s32 %v821, 248
        %v853 = vld [vmem:[%s600] sm:$0x1]
        %v854 = vlaneseq
        %v855 = vshrl.u32 %v854, 7
        %v856 = vsub.s32 0, %v855
        %v857 = vrot.slane %v853, %v856
        %vm858 = vcmp.eq.s32.totalorder %v821, %v857
        %vm859 = vcmp.eq.s32.totalorder %v822, %v857
        %vm860 = vcmp.eq.s32.totalorder %v823, %v857
        %vm861 = vcmp.eq.s32.totalorder %v824, %v857
        %vm862 = vcmp.eq.s32.totalorder %v825, %v857
        %vm863 = vcmp.eq.s32.totalorder %v826, %v857
        %vm864 = vcmp.eq.s32.totalorder %v827, %v857
        %vm865 = vcmp.eq.s32.totalorder %v828, %v857
        %vm866 = vcmp.eq.s32.totalorder %v829, %v857
        %vm867 = vcmp.eq.s32.totalorder %v830, %v857
        %vm868 = vcmp.eq.s32.totalorder %v831, %v857
        %vm869 = vcmp.eq.s32.totalorder %v832, %v857
        %vm870 = vcmp.eq.s32.totalorder %v833, %v857
        %vm871 = vcmp.eq.s32.totalorder %v834, %v857
        %vm872 = vcmp.eq.s32.totalorder %v835, %v857
        %vm873 = vcmp.eq.s32.totalorder %v836, %v857
        %vm874 = vcmp.eq.s32.totalorder %v837, %v857
        %vm875 = vcmp.eq.s32.totalorder %v838, %v857
        %vm876 = vcmp.eq.s32.totalorder %v839, %v857
        %vm877 = vcmp.eq.s32.totalorder %v840, %v857
        %vm878 = vcmp.eq.s32.totalorder %v841, %v857
        %vm879 = vcmp.eq.s32.totalorder %v842, %v857
        %vm880 = vcmp.eq.s32.totalorder %v843, %v857
        %vm881 = vcmp.eq.s32.totalorder %v844, %v857
        %vm882 = vcmp.eq.s32.totalorder %v845, %v857
        %vm883 = vcmp.eq.s32.totalorder %v846, %v857
        %vm884 = vcmp.eq.s32.totalorder %v847, %v857
        %vm885 = vcmp.eq.s32.totalorder %v848, %v857
        %vm886 = vcmp.eq.s32.totalorder %v849, %v857
        %vm887 = vcmp.eq.s32.totalorder %v850, %v857
        %vm888 = vcmp.eq.s32.totalorder %v851, %v857
        %vm889 = vcmp.eq.s32.totalorder %v852, %v857
        %v890 = vsel %vm858, 1, 0
        %v891 = vsel %vm859, 1, 0
        %v892 = vsel %vm860, 1, 0
        %v893 = vsel %vm861, 1, 0
        %v894 = vsel %vm862, 1, 0
        %v895 = vsel %vm863, 1, 0
        %v896 = vsel %vm864, 1, 0
        %v897 = vsel %vm865, 1, 0
        %v898 = vsel %vm866, 1, 0
        %v899 = vsel %vm867, 1, 0
        %v900 = vsel %vm868, 1, 0
        %v901 = vsel %vm869, 1, 0
        %v902 = vsel %vm870, 1, 0
        %v903 = vsel %vm871, 1, 0
        %v904 = vsel %vm872, 1, 0
        %v905 = vsel %vm873, 1, 0
        %v906 = vsel %vm874, 1, 0
        %v907 = vsel %vm875, 1, 0
        %v908 = vsel %vm876, 1, 0
        %v909 = vsel %vm877, 1, 0
        %v910 = vsel %vm878, 1, 0
        %v911 = vsel %vm879, 1, 0
        %v912 = vsel %vm880, 1, 0
        %v913 = vsel %vm881, 1, 0
        %v914 = vsel %vm882, 1, 0
        %v915 = vsel %vm883, 1, 0
        %v916 = vsel %vm884, 1, 0
        %v917 = vsel %vm885, 1, 0
        %v918 = vsel %vm886, 1, 0
        %v919 = vsel %vm887, 1, 0
        %v920 = vsel %vm888, 1, 0
        %v921 = vsel %vm889, 1, 0
        %v922 = vcvt.s32.f32 %v890
        %v923 = vcvt.s32.f32 %v891
        %v924 = vcvt.s32.f32 %v892
        %v925 = vcvt.s32.f32 %v893
        %v926 = vcvt.s32.f32 %v894
        %v927 = vcvt.s32.f32 %v895
        %v928 = vcvt.s32.f32 %v896
        %v929 = vcvt.s32.f32 %v897
        %v930 = vcvt.s32.f32 %v898
        %v931 = vcvt.s32.f32 %v899
        %v932 = vcvt.s32.f32 %v900
        %v933 = vcvt.s32.f32 %v901
        %v934 = vcvt.s32.f32 %v902
        %v935 = vcvt.s32.f32 %v903
        %v936 = vcvt.s32.f32 %v904
        %v937 = vcvt.s32.f32 %v905
        %v938 = vcvt.s32.f32 %v906
        %v939 = vcvt.s32.f32 %v907
        %v940 = vcvt.s32.f32 %v908
        %v941 = vcvt.s32.f32 %v909
        %v942 = vcvt.s32.f32 %v910
        %v943 = vcvt.s32.f32 %v911
        %v944 = vcvt.s32.f32 %v912
        %v945 = vcvt.s32.f32 %v913
        %v946 = vcvt.s32.f32 %v914
        %v947 = vcvt.s32.f32 %v915
        %v948 = vcvt.s32.f32 %v916
        %v949 = vcvt.s32.f32 %v917
        %v950 = vcvt.s32.f32 %v918
        %v951 = vcvt.s32.f32 %v919
        %v952 = vcvt.s32.f32 %v920
        %v953 = vcvt.s32.f32 %v921
        %v954 = vld [vmem:[%s600 + $0x1] sm:$0x1]
        %v955 = vlaneseq
        %v956 = vshrl.u32 %v955, 7
        %v957 = vsub.s32 0, %v956
        %v958 = vrot.slane %v954, %v957
        %vm959 = vcmp.eq.s32.totalorder %v821, %v958
        %vm960 = vcmp.eq.s32.totalorder %v822, %v958
        %vm961 = vcmp.eq.s32.totalorder %v823, %v958
        %vm962 = vcmp.eq.s32.totalorder %v824, %v958
        %vm963 = vcmp.eq.s32.totalorder %v825, %v958
        %vm964 = vcmp.eq.s32.totalorder %v826, %v958
        %vm965 = vcmp.eq.s32.totalorder %v827, %v958
        %vm966 = vcmp.eq.s32.totalorder %v828, %v958
        %vm967 = vcmp.eq.s32.totalorder %v829, %v958
        %vm968 = vcmp.eq.s32.totalorder %v830, %v958
        %vm969 = vcmp.eq.s32.totalorder %v831, %v958
        %vm970 = vcmp.eq.s32.totalorder %v832, %v958
        %vm971 = vcmp.eq.s32.totalorder %v833, %v958
        %vm972 = vcmp.eq.s32.totalorder %v834, %v958
        %vm973 = vcmp.eq.s32.totalorder %v835, %v958
        %vm974 = vcmp.eq.s32.totalorder %v836, %v958
        %vm975 = vcmp.eq.s32.totalorder %v837, %v958
        %vm976 = vcmp.eq.s32.totalorder %v838, %v958
        %vm977 = vcmp.eq.s32.totalorder %v839, %v958
        %vm978 = vcmp.eq.s32.totalorder %v840, %v958
        %vm979 = vcmp.eq.s32.totalorder %v841, %v958
        %vm980 = vcmp.eq.s32.totalorder %v842, %v958
        %vm981 = vcmp.eq.s32.totalorder %v843, %v958
        %vm982 = vcmp.eq.s32.totalorder %v844, %v958
        %vm983 = vcmp.eq.s32.totalorder %v845, %v958
        %vm984 = vcmp.eq.s32.totalorder %v846, %v958
        %vm985 = vcmp.eq.s32.totalorder %v847, %v958
        %vm986 = vcmp.eq.s32.totalorder %v848, %v958
        %vm987 = vcmp.eq.s32.totalorder %v849, %v958
        %vm988 = vcmp.eq.s32.totalorder %v850, %v958
        %vm989 = vcmp.eq.s32.totalorder %v851, %v958
        %vm990 = vcmp.eq.s32.totalorder %v852, %v958
        %v991 = vsel %vm959, 1, 0
        %v992 = vsel %vm960, 1, 0
        %v993 = vsel %vm961, 1, 0
        %v994 = vsel %vm962, 1, 0
        %v995 = vsel %vm963, 1, 0
        %v996 = vsel %vm964, 1, 0
        %v997 = vsel %vm965, 1, 0
        %v998 = vsel %vm966, 1, 0
        %v999 = vsel %vm967, 1, 0
        %v1000 = vsel %vm968, 1, 0
        %v1001 = vsel %vm969, 1, 0
        %v1002 = vsel %vm970, 1, 0
        %v1003 = vsel %vm971, 1, 0
        %v1004 = vsel %vm972, 1, 0
        %v1005 = vsel %vm973, 1, 0
        %v1006 = vsel %vm974, 1, 0
        %v1007 = vsel %vm975, 1, 0
        %v1008 = vsel %vm976, 1, 0
        %v1009 = vsel %vm977, 1, 0
        %v1010 = vsel %vm978, 1, 0
        %v1011 = vsel %vm979, 1, 0
        %v1012 = vsel %vm980, 1, 0
        %v1013 = vsel %vm981, 1, 0
        %v1014 = vsel %vm982, 1, 0
        %v1015 = vsel %vm983, 1, 0
        %v1016 = vsel %vm984, 1, 0
        %v1017 = vsel %vm985, 1, 0
        %v1018 = vsel %vm986, 1, 0
        %v1019 = vsel %vm987, 1, 0
        %v1020 = vsel %vm988, 1, 0
        %v1021 = vsel %vm989, 1, 0
        %v1022 = vsel %vm990, 1, 0
        %v1023 = vcvt.s32.f32 %v991
        %v1024 = vcvt.s32.f32 %v992
        %v1025 = vcvt.s32.f32 %v993
        %v1026 = vcvt.s32.f32 %v994
        %v1027 = vcvt.s32.f32 %v995
        %v1028 = vcvt.s32.f32 %v996
        %v1029 = vcvt.s32.f32 %v997
        %v1030 = vcvt.s32.f32 %v998
        %v1031 = vcvt.s32.f32 %v999
        %v1032 = vcvt.s32.f32 %v1000
        %v1033 = vcvt.s32.f32 %v1001
        %v1034 = vcvt.s32.f32 %v1002
        %v1035 = vcvt.s32.f32 %v1003
        %v1036 = vcvt.s32.f32 %v1004
        %v1037 = vcvt.s32.f32 %v1005
        %v1038 = vcvt.s32.f32 %v1006
        %v1039 = vcvt.s32.f32 %v1007
        %v1040 = vcvt.s32.f32 %v1008
        %v1041 = vcvt.s32.f32 %v1009
        %v1042 = vcvt.s32.f32 %v1010
        %v1043 = vcvt.s32.f32 %v1011
        %v1044 = vcvt.s32.f32 %v1012
        %v1045 = vcvt.s32.f32 %v1013
        %v1046 = vcvt.s32.f32 %v1014
        %v1047 = vcvt.s32.f32 %v1015
        %v1048 = vcvt.s32.f32 %v1016
        %v1049 = vcvt.s32.f32 %v1017
        %v1050 = vcvt.s32.f32 %v1018
        %v1051 = vcvt.s32.f32 %v1019
        %v1052 = vcvt.s32.f32 %v1020
        %v1053 = vcvt.s32.f32 %v1021
        %v1054 = vcvt.s32.f32 %v1022
        %v1055 = vld [vmem:[%s600 + $0x2] sm:$0x1]
        %v1056 = vlaneseq
        %v1057 = vshrl.u32 %v1056, 7
        %v1058 = vsub.s32 0, %v1057
        %v1059 = vrot.slane %v1055, %v1058
        %vm1060 = vcmp.eq.s32.totalorder %v821, %v1059
        %vm1061 = vcmp.eq.s32.totalorder %v822, %v1059
        %vm1062 = vcmp.eq.s32.totalorder %v823, %v1059
        %vm1063 = vcmp.eq.s32.totalorder %v824, %v1059
        %vm1064 = vcmp.eq.s32.totalorder %v825, %v1059
        %vm1065 = vcmp.eq.s32.totalorder %v826, %v1059
        %vm1066 = vcmp.eq.s32.totalorder %v827, %v1059
        %vm1067 = vcmp.eq.s32.totalorder %v828, %v1059
        %vm1068 = vcmp.eq.s32.totalorder %v829, %v1059
        %vm1069 = vcmp.eq.s32.totalorder %v830, %v1059
        %vm1070 = vcmp.eq.s32.totalorder %v831, %v1059
        %vm1071 = vcmp.eq.s32.totalorder %v832, %v1059
        %vm1072 = vcmp.eq.s32.totalorder %v833, %v1059
        %vm1073 = vcmp.eq.s32.totalorder %v834, %v1059
        %vm1074 = vcmp.eq.s32.totalorder %v835, %v1059
        %vm1075 = vcmp.eq.s32.totalorder %v836, %v1059
        %vm1076 = vcmp.eq.s32.totalorder %v837, %v1059
        %vm1077 = vcmp.eq.s32.totalorder %v838, %v1059
        %vm1078 = vcmp.eq.s32.totalorder %v839, %v1059
        %vm1079 = vcmp.eq.s32.totalorder %v840, %v1059
        %vm1080 = vcmp.eq.s32.totalorder %v841, %v1059
        %vm1081 = vcmp.eq.s32.totalorder %v842, %v1059
        %vm1082 = vcmp.eq.s32.totalorder %v843, %v1059
        %vm1083 = vcmp.eq.s32.totalorder %v844, %v1059
        %vm1084 = vcmp.eq.s32.totalorder %v845, %v1059
        %vm1085 = vcmp.eq.s32.totalorder %v846, %v1059
        %vm1086 = vcmp.eq.s32.totalorder %v847, %v1059
        %vm1087 = vcmp.eq.s32.totalorder %v848, %v1059
        %vm1088 = vcmp.eq.s32.totalorder %v849, %v1059
        %vm1089 = vcmp.eq.s32.totalorder %v850, %v1059
        %vm1090 = vcmp.eq.s32.totalorder %v851, %v1059
        %vm1091 = vcmp.eq.s32.totalorder %v852, %v1059
        %v1092 = vsel %vm1060, 1, 0
        %v1093 = vsel %vm1061, 1, 0
        %v1094 = vsel %vm1062, 1, 0
        %v1095 = vsel %vm1063, 1, 0
        %v1096 = vsel %vm1064, 1, 0
        %v1097 = vsel %vm1065, 1, 0
        %v1098 = vsel %vm1066, 1, 0
        %v1099 = vsel %vm1067, 1, 0
        %v1100 = vsel %vm1068, 1, 0
        %v1101 = vsel %vm1069, 1, 0
        %v1102 = vsel %vm1070, 1, 0
        %v1103 = vsel %vm1071, 1, 0
        %v1104 = vsel %vm1072, 1, 0
        %v1105 = vsel %vm1073, 1, 0
        %v1106 = vsel %vm1074, 1, 0
        %v1107 = vsel %vm1075, 1, 0
        %v1108 = vsel %vm1076, 1, 0
        %v1109 = vsel %vm1077, 1, 0
        %v1110 = vsel %vm1078, 1, 0
        %v1111 = vsel %vm1079, 1, 0
        %v1112 = vsel %vm1080, 1, 0
        %v1113 = vsel %vm1081, 1, 0
        %v1114 = vsel %vm1082, 1, 0
        %v1115 = vsel %vm1083, 1, 0
        %v1116 = vsel %vm1084, 1, 0
        %v1117 = vsel %vm1085, 1, 0
        %v1118 = vsel %vm1086, 1, 0
        %v1119 = vsel %vm1087, 1, 0
        %v1120 = vsel %vm1088, 1, 0
        %v1121 = vsel %vm1089, 1, 0
        %v1122 = vsel %vm1090, 1, 0
        %v1123 = vsel %vm1091, 1, 0
        %v1124 = vcvt.s32.f32 %v1092
        %v1125 = vcvt.s32.f32 %v1093
        %v1126 = vcvt.s32.f32 %v1094
        %v1127 = vcvt.s32.f32 %v1095
        %v1128 = vcvt.s32.f32 %v1096
        %v1129 = vcvt.s32.f32 %v1097
        %v1130 = vcvt.s32.f32 %v1098
        %v1131 = vcvt.s32.f32 %v1099
        %v1132 = vcvt.s32.f32 %v1100
        %v1133 = vcvt.s32.f32 %v1101
        %v1134 = vcvt.s32.f32 %v1102
        %v1135 = vcvt.s32.f32 %v1103
        %v1136 = vcvt.s32.f32 %v1104
        %v1137 = vcvt.s32.f32 %v1105
        %v1138 = vcvt.s32.f32 %v1106
        %v1139 = vcvt.s32.f32 %v1107
        %v1140 = vcvt.s32.f32 %v1108
        %v1141 = vcvt.s32.f32 %v1109
        %v1142 = vcvt.s32.f32 %v1110
        %v1143 = vcvt.s32.f32 %v1111
        %v1144 = vcvt.s32.f32 %v1112
        %v1145 = vcvt.s32.f32 %v1113
        %v1146 = vcvt.s32.f32 %v1114
        %v1147 = vcvt.s32.f32 %v1115
        %v1148 = vcvt.s32.f32 %v1116
        %v1149 = vcvt.s32.f32 %v1117
        %v1150 = vcvt.s32.f32 %v1118
        %v1151 = vcvt.s32.f32 %v1119
        %v1152 = vcvt.s32.f32 %v1120
        %v1153 = vcvt.s32.f32 %v1121
        %v1154 = vcvt.s32.f32 %v1122
        %v1155 = vcvt.s32.f32 %v1123
        %v1156 = vld [vmem:[%s600 + $0x3] sm:$0x1]
        %v1157 = vlaneseq
        %v1158 = vshrl.u32 %v1157, 7
        %v1159 = vsub.s32 0, %v1158
        %v1160 = vrot.slane %v1156, %v1159
        %vm1161 = vcmp.eq.s32.totalorder %v821, %v1160
        %vm1162 = vcmp.eq.s32.totalorder %v822, %v1160
        %vm1163 = vcmp.eq.s32.totalorder %v823, %v1160
        %vm1164 = vcmp.eq.s32.totalorder %v824, %v1160
        %vm1165 = vcmp.eq.s32.totalorder %v825, %v1160
        %vm1166 = vcmp.eq.s32.totalorder %v826, %v1160
        %vm1167 = vcmp.eq.s32.totalorder %v827, %v1160
        %vm1168 = vcmp.eq.s32.totalorder %v828, %v1160
        %vm1169 = vcmp.eq.s32.totalorder %v829, %v1160
        %vm1170 = vcmp.eq.s32.totalorder %v830, %v1160
        %vm1171 = vcmp.eq.s32.totalorder %v831, %v1160
        %vm1172 = vcmp.eq.s32.totalorder %v832, %v1160
        %vm1173 = vcmp.eq.s32.totalorder %v833, %v1160
        %vm1174 = vcmp.eq.s32.totalorder %v834, %v1160
        %vm1175 = vcmp.eq.s32.totalorder %v835, %v1160
        %vm1176 = vcmp.eq.s32.totalorder %v836, %v1160
        %vm1177 = vcmp.eq.s32.totalorder %v837, %v1160
        %vm1178 = vcmp.eq.s32.totalorder %v838, %v1160
        %vm1179 = vcmp.eq.s32.totalorder %v839, %v1160
        %vm1180 = vcmp.eq.s32.totalorder %v840, %v1160
        %vm1181 = vcmp.eq.s32.totalorder %v841, %v1160
        %vm1182 = vcmp.eq.s32.totalorder %v842, %v1160
        %vm1183 = vcmp.eq.s32.totalorder %v843, %v1160
        %vm1184 = vcmp.eq.s32.totalorder %v844, %v1160
        %vm1185 = vcmp.eq.s32.totalorder %v845, %v1160
        %vm1186 = vcmp.eq.s32.totalorder %v846, %v1160
        %vm1187 = vcmp.eq.s32.totalorder %v847, %v1160
        %vm1188 = vcmp.eq.s32.totalorder %v848, %v1160
        %vm1189 = vcmp.eq.s32.totalorder %v849, %v1160
        %vm1190 = vcmp.eq.s32.totalorder %v850, %v1160
        %vm1191 = vcmp.eq.s32.totalorder %v851, %v1160
        %vm1192 = vcmp.eq.s32.totalorder %v852, %v1160
        %v1193 = vsel %vm1161, 1, 0
        %v1194 = vsel %vm1162, 1, 0
        %v1195 = vsel %vm1163, 1, 0
        %v1196 = vsel %vm1164, 1, 0
        %v1197 = vsel %vm1165, 1, 0
        %v1198 = vsel %vm1166, 1, 0
        %v1199 = vsel %vm1167, 1, 0
        %v1200 = vsel %vm1168, 1, 0
        %v1201 = vsel %vm1169, 1, 0
        %v1202 = vsel %vm1170, 1, 0
        %v1203 = vsel %vm1171, 1, 0
        %v1204 = vsel %vm1172, 1, 0
        %v1205 = vsel %vm1173, 1, 0
        %v1206 = vsel %vm1174, 1, 0
        %v1207 = vsel %vm1175, 1, 0
        %v1208 = vsel %vm1176, 1, 0
        %v1209 = vsel %vm1177, 1, 0
        %v1210 = vsel %vm1178, 1, 0
        %v1211 = vsel %vm1179, 1, 0
        %v1212 = vsel %vm1180, 1, 0
        %v1213 = vsel %vm1181, 1, 0
        %v1214 = vsel %vm1182, 1, 0
        %v1215 = vsel %vm1183, 1, 0
        %v1216 = vsel %vm1184, 1, 0
        %v1217 = vsel %vm1185, 1, 0
        %v1218 = vsel %vm1186, 1, 0
        %v1219 = vsel %vm1187, 1, 0
        %v1220 = vsel %vm1188, 1, 0
        %v1221 = vsel %vm1189, 1, 0
        %v1222 = vsel %vm1190, 1, 0
        %v1223 = vsel %vm1191, 1, 0
        %v1224 = vsel %vm1192, 1, 0
        %v1225 = vcvt.s32.f32 %v1193
        %v1226 = vcvt.s32.f32 %v1194
        %v1227 = vcvt.s32.f32 %v1195
        %v1228 = vcvt.s32.f32 %v1196
        %v1229 = vcvt.s32.f32 %v1197
        %v1230 = vcvt.s32.f32 %v1198
        %v1231 = vcvt.s32.f32 %v1199
        %v1232 = vcvt.s32.f32 %v1200
        %v1233 = vcvt.s32.f32 %v1201
        %v1234 = vcvt.s32.f32 %v1202
        %v1235 = vcvt.s32.f32 %v1203
        %v1236 = vcvt.s32.f32 %v1204
        %v1237 = vcvt.s32.f32 %v1205
        %v1238 = vcvt.s32.f32 %v1206
        %v1239 = vcvt.s32.f32 %v1207
        %v1240 = vcvt.s32.f32 %v1208
        %v1241 = vcvt.s32.f32 %v1209
        %v1242 = vcvt.s32.f32 %v1210
        %v1243 = vcvt.s32.f32 %v1211
        %v1244 = vcvt.s32.f32 %v1212
        %v1245 = vcvt.s32.f32 %v1213
        %v1246 = vcvt.s32.f32 %v1214
        %v1247 = vcvt.s32.f32 %v1215
        %v1248 = vcvt.s32.f32 %v1216
        %v1249 = vcvt.s32.f32 %v1217
        %v1250 = vcvt.s32.f32 %v1218
        %v1251 = vcvt.s32.f32 %v1219
        %v1252 = vcvt.s32.f32 %v1220
        %v1253 = vcvt.s32.f32 %v1221
        %v1254 = vcvt.s32.f32 %v1222
        %v1255 = vcvt.s32.f32 %v1223
        %v1256 = vcvt.s32.f32 %v1224
        %v1257 = vld [vmem:[%s683] sm:$0xff]
        %v1258 = vld [vmem:[%s683 + $0x8] sm:$0xff]
        %v1259 = vld [vmem:[%s683 + $0x10] sm:$0xff]
        %v1260 = vld [vmem:[%s683 + $0x18] sm:$0xff]
        %v1261 = vld [vmem:[%s683 + $0x20] sm:$0xff]
        %v1262 = vld [vmem:[%s683 + $0x28] sm:$0xff]
        %v1263 = vld [vmem:[%s683 + $0x30] sm:$0xff]
        %v1264 = vld [vmem:[%s683 + $0x38] sm:$0xff]
        %v1265 = vld [vmem:[%s683 + $0x40] sm:$0xff]
        %v1266 = vld [vmem:[%s683 + $0x48] sm:$0xff]
        %v1267 = vld [vmem:[%s683 + $0x50] sm:$0xff]
        %v1268 = vld [vmem:[%s683 + $0x58] sm:$0xff]
        %v1269 = vld [vmem:[%s683 + $0x60] sm:$0xff]
        %v1270 = vld [vmem:[%s683 + $0x68] sm:$0xff]
        %v1271 = vld [vmem:[%s683 + $0x70] sm:$0xff]
        %v1272 = vld [vmem:[%s683 + $0x78] sm:$0xff]
        %v1273 = vld [vmem:[%s683 + $0x80] sm:$0xff]
        %v1274 = vld [vmem:[%s683 + $0x88] sm:$0xff]
        %1275 = vmatprep.subr.mxu0 %v1038
        %1276 = vmatpush1.msra.mxu0 %v937
        %1277 = vmatprep.subr.mxu0 %v1037
        %1278 = vmatpush1.msra.mxu0 %v936
        %1279 = vmatprep.subr.mxu0 %v1036
        %1280 = vmatpush1.msra.mxu0 %v935
        %1281 = vmatprep.subr.mxu0 %v1035
        %1282 = vmatpush1.msra.mxu0 %v934
        %1283 = vmatprep.subr.mxu0 %v1034
        %1284 = vmatpush1.msra.mxu0 %v933
        %1285 = vmatprep.subr.mxu0 %v1033
        %1286 = vmatpush1.msra.mxu0 %v932
        %1287 = vmatprep.subr.mxu0 %v1032
        %1288 = vmatpush1.msra.mxu0 %v931
        %1289 = vmatprep.subr.mxu0 %v1031
        %1290 = vmatpush1.msra.mxu0 %v930
        %1291 = vmatprep.subr.mxu0 %v1030
        %1292 = vmatpush1.msra.mxu0 %v929
        %1293 = vmatprep.subr.mxu0 %v1029
        %1294 = vmatpush1.msra.mxu0 %v928
        %1295 = vmatprep.subr.mxu0 %v1028
        %1296 = vmatpush1.msra.mxu0 %v927
        %1297 = vmatprep.subr.mxu0 %v1027
        %1298 = vmatpush1.msra.mxu0 %v926
        %1299 = vmatprep.subr.mxu0 %v1026
        %1300 = vmatpush1.msra.mxu0 %v925
        %1301 = vmatprep.subr.mxu0 %v1025
        %1302 = vmatpush1.msra.mxu0 %v924
        %1303 = vmatprep.subr.mxu0 %v1024
        %1304 = vmatpush1.msra.mxu0 %v923
        %1305 = vmatprep.subr.mxu0 %v1023
        %1306 = vmatpush1.msra.mxu0 %v922
        %1307 = vmatprep.subr.mxu0 %v1054
        %1308 = vmatpush2.msra.mxu0 %v953
        %1309 = vmatprep.subr.mxu0 %v1053
        %1310 = vmatpush2.msra.mxu0 %v952
        %1311 = vmatprep.subr.mxu0 %v1052
        %1312 = vmatpush2.msra.mxu0 %v951
        %1313 = vmatprep.subr.mxu0 %v1051
        %1314 = vmatpush2.msra.mxu0 %v950
        %1315 = vmatprep.subr.mxu0 %v1050
        %1316 = vmatpush2.msra.mxu0 %v949
        %1317 = vmatprep.subr.mxu0 %v1049
        %1318 = vmatpush2.msra.mxu0 %v948
        %1319 = vmatprep.subr.mxu0 %v1048
        %1320 = vmatpush2.msra.mxu0 %v947
        %1321 = vmatprep.subr.mxu0 %v1047
        %1322 = vmatpush2.msra.mxu0 %v946
        %1323 = vmatprep.subr.mxu0 %v1046
        %1324 = vmatpush2.msra.mxu0 %v945
        %1325 = vmatprep.subr.mxu0 %v1045
        %1326 = vmatpush2.msra.mxu0 %v944
        %1327 = vmatprep.subr.mxu0 %v1044
        %1328 = vmatpush2.msra.mxu0 %v943
        %1329 = vmatprep.subr.mxu0 %v1043
        %1330 = vmatpush2.msra.mxu0 %v942
        %1331 = vmatprep.subr.mxu0 %v1042
        %1332 = vmatpush2.msra.mxu0 %v941
        %1333 = vmatprep.subr.mxu0 %v1041
        %1334 = vmatpush2.msra.mxu0 %v940
        %1335 = vmatprep.subr.mxu0 %v1040
        %1336 = vmatpush2.msra.mxu0 %v939
        %1337 = vmatprep.subr.mxu0 %v1039
        %1338 = vmatpush2.msra.mxu0 %v938
        %1339 = vmatprep.mubr.f32.mxu0 %v1258
        %1340 = vmatmul.mubr.f32.gmra.mxu0 %v1257
        %v1341 = vpop.f32.mrf.mxu0
        %v1342 = vadd.f32 0.0, %v1341
        %v1343 = vpop.f32.mrf.mxu0
        %v1344 = vadd.f32 0.0, %v1343
        %1345 = vmatprep.mubr.f32.mxu0 %v1260
        %1346 = vmatmul.mubr.f32.gmra.mxu0 %v1259
        %v1347 = vpop.f32.mrf.mxu0
        %v1348 = vadd.f32 0.0, %v1347
        %v1349 = vpop.f32.mrf.mxu0
        %v1350 = vadd.f32 0.0, %v1349
        %1351 = vmatprep.mubr.f32.mxu0 %v1262
        %1352 = vmatmul.mubr.f32.gmra.mxu0 %v1261
        %v1353 = vpop.f32.mrf.mxu0
        %v1354 = vadd.f32 0.0, %v1353
        %v1355 = vpop.f32.mrf.mxu0
        %v1356 = vadd.f32 0.0, %v1355
        %1357 = vmatprep.mubr.f32.mxu0 %v1264
        %1358 = vmatmul.mubr.f32.gmra.mxu0 %v1263
        %v1359 = vpop.f32.mrf.mxu0
        %v1360 = vadd.f32 0.0, %v1359
        %v1361 = vpop.f32.mrf.mxu0
        %v1362 = vadd.f32 0.0, %v1361
        %1363 = vmatprep.mubr.f32.mxu0 %v1266
        %1364 = vmatmul.mubr.f32.gmra.mxu0 %v1265
        %v1365 = vpop.f32.mrf.mxu0
        %v1366 = vadd.f32 0.0, %v1365
        %v1367 = vpop.f32.mrf.mxu0
        %v1368 = vadd.f32 0.0, %v1367
        %1369 = vmatprep.mubr.f32.mxu0 %v1268
        %1370 = vmatmul.mubr.f32.gmra.mxu0 %v1267
        %v1371 = vpop.f32.mrf.mxu0
        %v1372 = vadd.f32 0.0, %v1371
        %v1373 = vpop.f32.mrf.mxu0
        %v1374 = vadd.f32 0.0, %v1373
        %1375 = vmatprep.mubr.f32.mxu0 %v1270
        %1376 = vmatmul.mubr.f32.gmra.mxu0 %v1269
        %v1377 = vpop.f32.mrf.mxu0
        %v1378 = vadd.f32 0.0, %v1377
        %v1379 = vpop.f32.mrf.mxu0
        %v1380 = vadd.f32 0.0, %v1379
        %1381 = vmatprep.mubr.f32.mxu0 %v1272
        %1382 = vmatmul.mubr.f32.gmra.mxu0 %v1271
        %v1383 = vpop.f32.mrf.mxu0
        %v1384 = vadd.f32 0.0, %v1383
        %v1385 = vpop.f32.mrf.mxu0
        %v1386 = vadd.f32 0.0, %v1385
        %1387 = vmatprep.mubr.f32.mxu0 %v1274
        %1388 = vmatmul.mubr.f32.gmra.mxu0 %v1273
        %v1389 = vpop.f32.mrf.mxu0
        %v1390 = vadd.f32 0.0, %v1389
        %v1391 = vpop.f32.mrf.mxu0
        %v1392 = vadd.f32 0.0, %v1391
        %1393 = vdwg.mxu0
        %1394 = vmatprep.subr.mxu0 %v1240
        %1395 = vmatpush1.msra.mxu0 %v1139
        %1396 = vmatprep.subr.mxu0 %v1239
        %1397 = vmatpush1.msra.mxu0 %v1138
        %1398 = vmatprep.subr.mxu0 %v1238
        %1399 = vmatpush1.msra.mxu0 %v1137
        %1400 = vmatprep.subr.mxu0 %v1237
        %1401 = vmatpush1.msra.mxu0 %v1136
        %1402 = vmatprep.subr.mxu0 %v1236
        %1403 = vmatpush1.msra.mxu0 %v1135
        %1404 = vmatprep.subr.mxu0 %v1235
        %1405 = vmatpush1.msra.mxu0 %v1134
        %1406 = vmatprep.subr.mxu0 %v1234
        %1407 = vmatpush1.msra.mxu0 %v1133
        %1408 = vmatprep.subr.mxu0 %v1233
        %1409 = vmatpush1.msra.mxu0 %v1132
        %1410 = vmatprep.subr.mxu0 %v1232
        %1411 = vmatpush1.msra.mxu0 %v1131
        %1412 = vmatprep.subr.mxu0 %v1231
        %1413 = vmatpush1.msra.mxu0 %v1130
        %1414 = vmatprep.subr.mxu0 %v1230
        %1415 = vmatpush1.msra.mxu0 %v1129
        %1416 = vmatprep.subr.mxu0 %v1229
        %1417 = vmatpush1.msra.mxu0 %v1128
        %1418 = vmatprep.subr.mxu0 %v1228
        %1419 = vmatpush1.msra.mxu0 %v1127
        %1420 = vmatprep.subr.mxu0 %v1227
        %1421 = vmatpush1.msra.mxu0 %v1126
        %1422 = vmatprep.subr.mxu0 %v1226
        %1423 = vmatpush1.msra.mxu0 %v1125
        %1424 = vmatprep.subr.mxu0 %v1225
        %1425 = vmatpush1.msra.mxu0 %v1124
        %1426 = vmatprep.subr.mxu0 %v1256
        %1427 = vmatpush2.msra.mxu0 %v1155
        %1428 = vmatprep.subr.mxu0 %v1255
        %1429 = vmatpush2.msra.mxu0 %v1154
        %1430 = vmatprep.subr.mxu0 %v1254
        %1431 = vmatpush2.msra.mxu0 %v1153
        %1432 = vmatprep.subr.mxu0 %v1253
        %1433 = vmatpush2.msra.mxu0 %v1152
        %1434 = vmatprep.subr.mxu0 %v1252
        %1435 = vmatpush2.msra.mxu0 %v1151
        %1436 = vmatprep.subr.mxu0 %v1251
        %1437 = vmatpush2.msra.mxu0 %v1150
        %1438 = vmatprep.subr.mxu0 %v1250
        %1439 = vmatpush2.msra.mxu0 %v1149
        %1440 = vmatprep.subr.mxu0 %v1249
        %1441 = vmatpush2.msra.mxu0 %v1148
        %1442 = vmatprep.subr.mxu0 %v1248
        %1443 = vmatpush2.msra.mxu0 %v1147
        %1444 = vmatprep.subr.mxu0 %v1247
        %1445 = vmatpush2.msra.mxu0 %v1146
        %1446 = vmatprep.subr.mxu0 %v1246
        %1447 = vmatpush2.msra.mxu0 %v1145
        %1448 = vmatprep.subr.mxu0 %v1245
        %1449 = vmatpush2.msra.mxu0 %v1144
        %1450 = vmatprep.subr.mxu0 %v1244
        %1451 = vmatpush2.msra.mxu0 %v1143
        %1452 = vmatprep.subr.mxu0 %v1243
        %1453 = vmatpush2.msra.mxu0 %v1142
        %1454 = vmatprep.subr.mxu0 %v1242
        %1455 = vmatpush2.msra.mxu0 %v1141
        %1456 = vmatprep.subr.mxu0 %v1241
        %1457 = vmatpush2.msra.mxu0 %v1140
        %1458 = vmatprep.mubr.f32.mxu0 %v1258
        %1459 = vmatmul.mubr.f32.gmra.mxu0 %v1257
        %v1460 = vpop.f32.mrf.mxu0
        %v1461 = vadd.f32 0.0, %v1460
        %v1462 = vpop.f32.mrf.mxu0
        %v1463 = vadd.f32 0.0, %v1462
        %1464 = vmatprep.mubr.f32.mxu0 %v1260
        %1465 = vmatmul.mubr.f32.gmra.mxu0 %v1259
        %v1466 = vpop.f32.mrf.mxu0
        %v1467 = vadd.f32 0.0, %v1466
        %v1468 = vpop.f32.mrf.mxu0
        %v1469 = vadd.f32 0.0, %v1468
        %1470 = vmatprep.mubr.f32.mxu0 %v1262
        %1471 = vmatmul.mubr.f32.gmra.mxu0 %v1261
        %v1472 = vpop.f32.mrf.mxu0
        %v1473 = vadd.f32 0.0, %v1472
        %v1474 = vpop.f32.mrf.mxu0
        %v1475 = vadd.f32 0.0, %v1474
        %1476 = vmatprep.mubr.f32.mxu0 %v1264
        %1477 = vmatmul.mubr.f32.gmra.mxu0 %v1263
        %v1478 = vpop.f32.mrf.mxu0
        %v1479 = vadd.f32 0.0, %v1478
        %v1480 = vpop.f32.mrf.mxu0
        %v1481 = vadd.f32 0.0, %v1480
        %1482 = vmatprep.mubr.f32.mxu0 %v1266
        %1483 = vmatmul.mubr.f32.gmra.mxu0 %v1265
        %v1484 = vpop.f32.mrf.mxu0
        %v1485 = vadd.f32 0.0, %v1484
        %v1486 = vpop.f32.mrf.mxu0
        %v1487 = vadd.f32 0.0, %v1486
        %1488 = vmatprep.mubr.f32.mxu0 %v1268
        %1489 = vmatmul.mubr.f32.gmra.mxu0 %v1267
        %v1490 = vpop.f32.mrf.mxu0
        %v1491 = vadd.f32 0.0, %v1490
        %v1492 = vpop.f32.mrf.mxu0
        %v1493 = vadd.f32 0.0, %v1492
        %1494 = vmatprep.mubr.f32.mxu0 %v1270
        %1495 = vmatmul.mubr.f32.gmra.mxu0 %v1269
        %v1496 = vpop.f32.mrf.mxu0
        %v1497 = vadd.f32 0.0, %v1496
        %v1498 = vpop.f32.mrf.mxu0
        %v1499 = vadd.f32 0.0, %v1498
        %1500 = vmatprep.mubr.f32.mxu0 %v1272
        %1501 = vmatmul.mubr.f32.gmra.mxu0 %v1271
        %v1502 = vpop.f32.mrf.mxu0
        %v1503 = vadd.f32 0.0, %v1502
        %v1504 = vpop.f32.mrf.mxu0
        %v1505 = vadd.f32 0.0, %v1504
        %1506 = vmatprep.mubr.f32.mxu0 %v1274
        %1507 = vmatmul.mubr.f32.gmra.mxu0 %v1273
        %v1508 = vpop.f32.mrf.mxu0
        %v1509 = vadd.f32 0.0, %v1508
        %v1510 = vpop.f32.mrf.mxu0
        %v1511 = vadd.f32 0.0, %v1510
        %1512 = vdwg.mxu0
        %v1513 = vld [vmem:[%s691] sm:$0x7]
        %v1514 = vsub.f32 %v1513, %v1342
        %v1515 = vsub.f32 %v1513, %v1344
        %v1516 = vsub.f32 %v1513, %v1461
        %v1517 = vsub.f32 %v1513, %v1463
        %v1518 = vld [vmem:[%s6] sm:$0xff]
        %v1519 = vld [vmem:[%s6 + $0x8] sm:$0xff]
        %v1520 = vld [vmem:[%s6 + $0x10] sm:$0xff]
        %v1521 = vld [vmem:[%s6 + $0x18] sm:$0xff]
        %v1522 = vld [vmem:[%s7] sm:$0xff]
        %v1523 = vld [vmem:[%s7 + $0x8] sm:$0xff]
        %v1524 = vld [vmem:[%s7 + $0x10] sm:$0xff]
        %v1525 = vld [vmem:[%s7 + $0x18] sm:$0xff]
        %1527 = vset.pattern.permute.xlu0 0
        %1528 = vperm.xlu0 %1527, %v1518
        %v1529 = vpop.permute.xlu0 %1528
        %1532 = vset.pattern.permute.xlu0 0
        %1533 = vperm.xlu0 %1532, %v1519
        %v1534 = vpop.permute.xlu0 %1533
        %1537 = vset.pattern.permute.xlu0 0
        %1538 = vperm.xlu0 %1537, %v1520
        %v1539 = vpop.permute.xlu0 %1538
        %1542 = vset.pattern.permute.xlu0 0
        %1543 = vperm.xlu0 %1542, %v1521
        %v1544 = vpop.permute.xlu0 %1543
        %v1546 = vlaneseq
        %v1547 = vshrl.u32 %v1546, 7
        %v1548 = vsub.s32 0, %v1547
        %v1549 = vrot.slane %v1514, %v1548
        %v1550 = vlaneseq
        %v1551 = vshrl.u32 %v1550, 7
        %v1552 = vsub.s32 0, %v1551
        %v1553 = vrot.slane %v1515, %v1552
        %v1554 = vlaneseq
        %v1555 = vshrl.u32 %v1554, 7
        %v1556 = vsub.s32 0, %v1555
        %v1557 = vrot.slane %v1516, %v1556
        %v1558 = vlaneseq
        %v1559 = vshrl.u32 %v1558, 7
        %v1560 = vsub.s32 0, %v1559
        %v1561 = vrot.slane %v1517, %v1560
        %v1562 = vmul.f32 %v1529, %v1549
        %v1563 = vmul.f32 %v1529, %v1553
        %v1564 = vmul.f32 %v1529, %v1557
        %v1565 = vmul.f32 %v1529, %v1561
        %v1566 = vmul.f32 %v1534, %v1549
        %v1567 = vmul.f32 %v1534, %v1553
        %v1568 = vmul.f32 %v1534, %v1557
        %v1569 = vmul.f32 %v1534, %v1561
        %v1570 = vmul.f32 %v1539, %v1549
        %v1571 = vmul.f32 %v1539, %v1553
        %v1572 = vmul.f32 %v1539, %v1557
        %v1573 = vmul.f32 %v1539, %v1561
        %v1574 = vmul.f32 %v1544, %v1549
        %v1575 = vmul.f32 %v1544, %v1553
        %v1576 = vmul.f32 %v1544, %v1557
        %v1577 = vmul.f32 %v1544, %v1561
        %1578 = vset.pattern.permute.xlu0 1
        %1579 = vperm.xlu0 %1578, %v1518
        %v1580 = vpop.permute.xlu0 %1579
        %1582 = vset.pattern.permute.xlu0 1
        %1583 = vperm.xlu0 %1582, %v1519
        %v1584 = vpop.permute.xlu0 %1583
        %1586 = vset.pattern.permute.xlu0 1
        %1587 = vperm.xlu0 %1586, %v1520
        %v1588 = vpop.permute.xlu0 %1587
        %1590 = vset.pattern.permute.xlu0 1
        %1591 = vperm.xlu0 %1590, %v1521
        %v1592 = vpop.permute.xlu0 %1591
        %v1594 = vlaneseq
        %v1595 = vshrl.u32 %v1594, 7
        %v1596 = vsub.s32 1, %v1595
        %v1597 = vrot.slane %v1514, %v1596
        %v1598 = vlaneseq
        %v1599 = vshrl.u32 %v1598, 7
        %v1600 = vsub.s32 1, %v1599
        %v1601 = vrot.slane %v1515, %v1600
        %v1602 = vlaneseq
        %v1603 = vshrl.u32 %v1602, 7
        %v1604 = vsub.s32 1, %v1603
        %v1605 = vrot.slane %v1516, %v1604
        %v1606 = vlaneseq
        %v1607 = vshrl.u32 %v1606, 7
        %v1608 = vsub.s32 1, %v1607
        %v1609 = vrot.slane %v1517, %v1608
        %v1610 = vmul.f32 %v1580, %v1597
        %v1611 = vmul.f32 %v1580, %v1601
        %v1612 = vmul.f32 %v1580, %v1605
        %v1613 = vmul.f32 %v1580, %v1609
        %v1614 = vmul.f32 %v1584, %v1597
        %v1615 = vmul.f32 %v1584, %v1601
        %v1616 = vmul.f32 %v1584, %v1605
        %v1617 = vmul.f32 %v1584, %v1609
        %v1618 = vmul.f32 %v1588, %v1597
        %v1619 = vmul.f32 %v1588, %v1601
        %v1620 = vmul.f32 %v1588, %v1605
        %v1621 = vmul.f32 %v1588, %v1609
        %v1622 = vmul.f32 %v1592, %v1597
        %v1623 = vmul.f32 %v1592, %v1601
        %v1624 = vmul.f32 %v1592, %v1605
        %v1625 = vmul.f32 %v1592, %v1609
        %v1626 = vadd.f32 %v1562, %v1610
        %v1627 = vadd.f32 %v1563, %v1611
        %v1628 = vadd.f32 %v1564, %v1612
        %v1629 = vadd.f32 %v1565, %v1613
        %v1630 = vadd.f32 %v1566, %v1614
        %v1631 = vadd.f32 %v1567, %v1615
        %v1632 = vadd.f32 %v1568, %v1616
        %v1633 = vadd.f32 %v1569, %v1617
        %v1634 = vadd.f32 %v1570, %v1618
        %v1635 = vadd.f32 %v1571, %v1619
        %v1636 = vadd.f32 %v1572, %v1620
        %v1637 = vadd.f32 %v1573, %v1621
        %v1638 = vadd.f32 %v1574, %v1622
        %v1639 = vadd.f32 %v1575, %v1623
        %v1640 = vadd.f32 %v1576, %v1624
        %v1641 = vadd.f32 %v1577, %v1625
        %1642 = vset.pattern.permute.xlu0 2
        %1643 = vperm.xlu0 %1642, %v1518
        %v1644 = vpop.permute.xlu0 %1643
        %1646 = vset.pattern.permute.xlu0 2
        %1647 = vperm.xlu0 %1646, %v1519
        %v1648 = vpop.permute.xlu0 %1647
        %1650 = vset.pattern.permute.xlu0 2
        %1651 = vperm.xlu0 %1650, %v1520
        %v1652 = vpop.permute.xlu0 %1651
        %1654 = vset.pattern.permute.xlu0 2
        %1655 = vperm.xlu0 %1654, %v1521
        %v1656 = vpop.permute.xlu0 %1655
        %v1658 = vlaneseq
        %v1659 = vshrl.u32 %v1658, 7
        %v1660 = vsub.s32 2, %v1659
        %v1661 = vrot.slane %v1514, %v1660
        %v1662 = vlaneseq
        %v1663 = vshrl.u32 %v1662, 7
        %v1664 = vsub.s32 2, %v1663
        %v1665 = vrot.slane %v1515, %v1664
        %v1666 = vlaneseq
        %v1667 = vshrl.u32 %v1666, 7
        %v1668 = vsub.s32 2, %v1667
        %v1669 = vrot.slane %v1516, %v1668
        %v1670 = vlaneseq
        %v1671 = vshrl.u32 %v1670, 7
        %v1672 = vsub.s32 2, %v1671
        %v1673 = vrot.slane %v1517, %v1672
        %v1674 = vmul.f32 %v1644, %v1661
        %v1675 = vmul.f32 %v1644, %v1665
        %v1676 = vmul.f32 %v1644, %v1669
        %v1677 = vmul.f32 %v1644, %v1673
        %v1678 = vmul.f32 %v1648, %v1661
        %v1679 = vmul.f32 %v1648, %v1665
        %v1680 = vmul.f32 %v1648, %v1669
        %v1681 = vmul.f32 %v1648, %v1673
        %v1682 = vmul.f32 %v1652, %v1661
        %v1683 = vmul.f32 %v1652, %v1665
        %v1684 = vmul.f32 %v1652, %v1669
        %v1685 = vmul.f32 %v1652, %v1673
        %v1686 = vmul.f32 %v1656, %v1661
        %v1687 = vmul.f32 %v1656, %v1665
        %v1688 = vmul.f32 %v1656, %v1669
        %v1689 = vmul.f32 %v1656, %v1673
        %v1690 = vadd.f32 %v1626, %v1674
        %v1691 = vadd.f32 %v1627, %v1675
        %v1692 = vadd.f32 %v1628, %v1676
        %v1693 = vadd.f32 %v1629, %v1677
        %v1694 = vadd.f32 %v1630, %v1678
        %v1695 = vadd.f32 %v1631, %v1679
        %v1696 = vadd.f32 %v1632, %v1680
        %v1697 = vadd.f32 %v1633, %v1681
        %v1698 = vadd.f32 %v1634, %v1682
        %v1699 = vadd.f32 %v1635, %v1683
        %v1700 = vadd.f32 %v1636, %v1684
        %v1701 = vadd.f32 %v1637, %v1685
        %v1702 = vadd.f32 %v1638, %v1686
        %v1703 = vadd.f32 %v1639, %v1687
        %v1704 = vadd.f32 %v1640, %v1688
        %v1705 = vadd.f32 %v1641, %v1689
        %1707 = vset.pattern.permute.xlu0 0
        %1708 = vperm.xlu0 %1707, %v1522
        %v1709 = vpop.permute.xlu0 %1708
        %1712 = vset.pattern.permute.xlu0 0
        %1713 = vperm.xlu0 %1712, %v1523
        %v1714 = vpop.permute.xlu0 %1713
        %1717 = vset.pattern.permute.xlu0 0
        %1718 = vperm.xlu0 %1717, %v1524
        %v1719 = vpop.permute.xlu0 %1718
        %1722 = vset.pattern.permute.xlu0 0
        %1723 = vperm.xlu0 %1722, %v1525
        %v1724 = vpop.permute.xlu0 %1723
        %v1726 = vadd.f32 %v1690, %v1709
        %v1727 = vadd.f32 %v1691, %v1709
        %v1728 = vadd.f32 %v1692, %v1709
        %v1729 = vadd.f32 %v1693, %v1709
        %v1730 = vadd.f32 %v1694, %v1714
        %v1731 = vadd.f32 %v1695, %v1714
        %v1732 = vadd.f32 %v1696, %v1714
        %v1733 = vadd.f32 %v1697, %v1714
        %v1734 = vadd.f32 %v1698, %v1719
        %v1735 = vadd.f32 %v1699, %v1719
        %v1736 = vadd.f32 %v1700, %v1719
        %v1737 = vadd.f32 %v1701, %v1719
        %v1738 = vadd.f32 %v1702, %v1724
        %v1739 = vadd.f32 %v1703, %v1724
        %v1740 = vadd.f32 %v1704, %v1724
        %v1741 = vadd.f32 %v1705, %v1724
        %v1742 = vld [vmem:[#allocation7] sm:$0xff]
        %v1743 = vld [vmem:[#allocation7 + $0x8] sm:$0xff]
        %v1744 = vld [vmem:[#allocation7 + $0x10] sm:$0xff]
        %v1745 = vld [vmem:[#allocation7 + $0x18] sm:$0xff]
        %v1746 = vmax.f32 %v1726, 0.0
        %v1747 = vmax.f32 %v1727, 0.0
        %v1748 = vmax.f32 %v1728, 0.0
        %v1749 = vmax.f32 %v1729, 0.0
        %v1750 = vmax.f32 %v1730, 0.0
        %v1751 = vmax.f32 %v1731, 0.0
        %v1752 = vmax.f32 %v1732, 0.0
        %v1753 = vmax.f32 %v1733, 0.0
        %v1754 = vmax.f32 %v1734, 0.0
        %v1755 = vmax.f32 %v1735, 0.0
        %v1756 = vmax.f32 %v1736, 0.0
        %v1757 = vmax.f32 %v1737, 0.0
        %v1758 = vmax.f32 %v1738, 0.0
        %v1759 = vmax.f32 %v1739, 0.0
        %v1760 = vmax.f32 %v1740, 0.0
        %v1761 = vmax.f32 %v1741, 0.0
        %v1762 = vld [vmem:[%s9] sm:$0xff]
        %v1763 = vld [vmem:[%s9 + $0x8] sm:$0xff]
        %v1764 = vld [vmem:[%s9 + $0x10] sm:$0xff]
        %v1765 = vld [vmem:[%s9 + $0x18] sm:$0xff]
        %1767 = vset.pattern.permute.xlu0 0
        %1768 = vperm.xlu0 %1767, %v1762
        %v1769 = vpop.permute.xlu0 %1768
        %1772 = vset.pattern.permute.xlu0 0
        %1773 = vperm.xlu0 %1772, %v1763
        %v1774 = vpop.permute.xlu0 %1773
        %1777 = vset.pattern.permute.xlu0 0
        %1778 = vperm.xlu0 %1777, %v1764
        %v1779 = vpop.permute.xlu0 %1778
        %1782 = vset.pattern.permute.xlu0 0
        %1783 = vperm.xlu0 %1782, %v1765
        %v1784 = vpop.permute.xlu0 %1783
        %vm1786 = vcmask 261120
        %v1788 = vsel %vm1786, %v1742, 0
        %v1791 = vsel %vm1786, %v1743, 0
        %v1794 = vsel %vm1786, %v1744, 0
        %v1797 = vsel %vm1786, %v1745, 0
        %1799 = vmatprep.subr.mxu0 0.0
        %1800 = vmatpush1.msra.mxu0 0.0
        %1801 = vmatprep.subr.mxu0 0.0
        %1802 = vmatpush1.msra.mxu0 0.0
        %1803 = vmatprep.subr.mxu0 0.0
        %1804 = vmatpush1.msra.mxu0 0.0
        %1805 = vmatprep.subr.mxu0 0.0
        %1806 = vmatpush1.msra.mxu0 0.0
        %1807 = vmatprep.subr.mxu0 0.0
        %1808 = vmatpush1.msra.mxu0 0.0
        %1809 = vmatprep.subr.mxu0 0.0
        %1810 = vmatpush1.msra.mxu0 0.0
        %1811 = vmatprep.subr.mxu0 0.0
        %1812 = vmatpush1.msra.mxu0 0.0
        %1813 = vmatprep.subr.mxu0 0.0
        %1814 = vmatpush1.msra.mxu0 0.0
        %1815 = vmatprep.subr.mxu0 0.0
        %1816 = vmatpush1.msra.mxu0 0.0
        %1817 = vmatprep.subr.mxu0 0.0
        %1818 = vmatpush1.msra.mxu0 0.0
        %1819 = vmatprep.subr.mxu0 0.0
        %1820 = vmatpush1.msra.mxu0 0.0
        %1821 = vmatprep.subr.mxu0 0.0
        %1822 = vmatpush1.msra.mxu0 0.0
        %1823 = vmatprep.subr.mxu0 %v1759
        %1824 = vmatpush1.msra.mxu0 %v1758
        %1825 = vmatprep.subr.mxu0 %v1755
        %1826 = vmatpush1.msra.mxu0 %v1754
        %1827 = vmatprep.subr.mxu0 %v1751
        %1828 = vmatpush1.msra.mxu0 %v1750
        %1829 = vmatprep.subr.mxu0 %v1747
        %1830 = vmatpush1.msra.mxu0 %v1746
        %1831 = vmatprep.subr.mxu0 0.0
        %1832 = vmatpush2.msra.mxu0 0.0
        %1833 = vmatprep.subr.mxu0 0.0
        %1834 = vmatpush2.msra.mxu0 0.0
        %1835 = vmatprep.subr.mxu0 0.0
        %1836 = vmatpush2.msra.mxu0 0.0
        %1837 = vmatprep.subr.mxu0 0.0
        %1838 = vmatpush2.msra.mxu0 0.0
        %1839 = vmatprep.subr.mxu0 0.0
        %1840 = vmatpush2.msra.mxu0 0.0
        %1841 = vmatprep.subr.mxu0 0.0
        %1842 = vmatpush2.msra.mxu0 0.0
        %1843 = vmatprep.subr.mxu0 0.0
        %1844 = vmatpush2.msra.mxu0 0.0
        %1845 = vmatprep.subr.mxu0 0.0
        %1846 = vmatpush2.msra.mxu0 0.0
        %1847 = vmatprep.subr.mxu0 0.0
        %1848 = vmatpush2.msra.mxu0 0.0
        %1849 = vmatprep.subr.mxu0 0.0
        %1850 = vmatpush2.msra.mxu0 0.0
        %1851 = vmatprep.subr.mxu0 0.0
        %1852 = vmatpush2.msra.mxu0 0.0
        %1853 = vmatprep.subr.mxu0 0.0
        %1854 = vmatpush2.msra.mxu0 0.0
        %1855 = vmatprep.subr.mxu0 0.0
        %1856 = vmatpush2.msra.mxu0 0.0
        %1857 = vmatprep.subr.mxu0 0.0
        %1858 = vmatpush2.msra.mxu0 0.0
        %1859 = vmatprep.subr.mxu0 0.0
        %1860 = vmatpush2.msra.mxu0 0.0
        %1861 = vmatprep.subr.mxu0 0.0
        %1862 = vmatpush2.msra.mxu0 0.0
        %1863 = vmatprep.mubr.f32.mxu0 0.0
        %1864 = vmatmul.mubr.f32.gmra.mxu0 %v1788
        %v1865 = vpop.f32.mrf.mxu0
        %v1866 = vadd.f32 %v1769, %v1865
        %v1867 = vpop.f32.mrf.mxu0
        %v1868 = vadd.f32 %v1769, %v1867
        %1869 = vmatprep.mubr.f32.mxu0 0.0
        %1870 = vmatmul.mubr.f32.gmra.mxu0 %v1791
        %v1871 = vpop.f32.mrf.mxu0
        %v1872 = vadd.f32 %v1774, %v1871
        %v1873 = vpop.f32.mrf.mxu0
        %v1874 = vadd.f32 %v1774, %v1873
        %1875 = vmatprep.mubr.f32.mxu0 0.0
        %1876 = vmatmul.mubr.f32.gmra.mxu0 %v1794
        %v1877 = vpop.f32.mrf.mxu0
        %v1878 = vadd.f32 %v1779, %v1877
        %v1879 = vpop.f32.mrf.mxu0
        %v1880 = vadd.f32 %v1779, %v1879
        %1881 = vmatprep.mubr.f32.mxu0 0.0
        %1882 = vmatmul.mubr.f32.gmra.mxu0 %v1797
        %v1883 = vpop.f32.mrf.mxu0
        %v1884 = vadd.f32 %v1784, %v1883
        %v1885 = vpop.f32.mrf.mxu0
        %v1886 = vadd.f32 %v1784, %v1885
        %1887 = vdwg.mxu0
        %1888 = vmatprep.subr.mxu0 0.0
        %1889 = vmatpush1.msra.mxu0 0.0
        %1890 = vmatprep.subr.mxu0 0.0
        %1891 = vmatpush1.msra.mxu0 0.0
        %1892 = vmatprep.subr.mxu0 0.0
        %1893 = vmatpush1.msra.mxu0 0.0
        %1894 = vmatprep.subr.mxu0 0.0
        %1895 = vmatpush1.msra.mxu0 0.0
        %1896 = vmatprep.subr.mxu0 0.0
        %1897 = vmatpush1.msra.mxu0 0.0
        %1898 = vmatprep.subr.mxu0 0.0
        %1899 = vmatpush1.msra.mxu0 0.0
        %1900 = vmatprep.subr.mxu0 0.0
        %1901 = vmatpush1.msra.mxu0 0.0
        %1902 = vmatprep.subr.mxu0 0.0
        %1903 = vmatpush1.msra.mxu0 0.0
        %1904 = vmatprep.subr.mxu0 0.0
        %1905 = vmatpush1.msra.mxu0 0.0
        %1906 = vmatprep.subr.mxu0 0.0
        %1907 = vmatpush1.msra.mxu0 0.0
        %1908 = vmatprep.subr.mxu0 0.0
        %1909 = vmatpush1.msra.mxu0 0.0
        %1910 = vmatprep.subr.mxu0 0.0
        %1911 = vmatpush1.msra.mxu0 0.0
        %1912 = vmatprep.subr.mxu0 %v1761
        %1913 = vmatpush1.msra.mxu0 %v1760
        %1914 = vmatprep.subr.mxu0 %v1757
        %1915 = vmatpush1.msra.mxu0 %v1756
        %1916 = vmatprep.subr.mxu0 %v1753
        %1917 = vmatpush1.msra.mxu0 %v1752
        %1918 = vmatprep.subr.mxu0 %v1749
        %1919 = vmatpush1.msra.mxu0 %v1748
        %1920 = vmatprep.subr.mxu0 0.0
        %1921 = vmatpush2.msra.mxu0 0.0
        %1922 = vmatprep.subr.mxu0 0.0
        %1923 = vmatpush2.msra.mxu0 0.0
        %1924 = vmatprep.subr.mxu0 0.0
        %1925 = vmatpush2.msra.mxu0 0.0
        %1926 = vmatprep.subr.mxu0 0.0
        %1927 = vmatpush2.msra.mxu0 0.0
        %1928 = vmatprep.subr.mxu0 0.0
        %1929 = vmatpush2.msra.mxu0 0.0
        %1930 = vmatprep.subr.mxu0 0.0
        %1931 = vmatpush2.msra.mxu0 0.0
        %1932 = vmatprep.subr.mxu0 0.0
        %1933 = vmatpush2.msra.mxu0 0.0
        %1934 = vmatprep.subr.mxu0 0.0
        %1935 = vmatpush2.msra.mxu0 0.0
        %1936 = vmatprep.subr.mxu0 0.0
        %1937 = vmatpush2.msra.mxu0 0.0
        %1938 = vmatprep.subr.mxu0 0.0
        %1939 = vmatpush2.msra.mxu0 0.0
        %1940 = vmatprep.subr.mxu0 0.0
        %1941 = vmatpush2.msra.mxu0 0.0
        %1942 = vmatprep.subr.mxu0 0.0
        %1943 = vmatpush2.msra.mxu0 0.0
        %1944 = vmatprep.subr.mxu0 0.0
        %1945 = vmatpush2.msra.mxu0 0.0
        %1946 = vmatprep.subr.mxu0 0.0
        %1947 = vmatpush2.msra.mxu0 0.0
        %1948 = vmatprep.subr.mxu0 0.0
        %1949 = vmatpush2.msra.mxu0 0.0
        %1950 = vmatprep.subr.mxu0 0.0
        %1951 = vmatpush2.msra.mxu0 0.0
        %1952 = vmatprep.mubr.f32.mxu0 0.0
        %1953 = vmatmul.mubr.f32.gmra.mxu0 %v1788
        %v1954 = vpop.f32.mrf.mxu0
        %v1955 = vadd.f32 %v1769, %v1954
        %v1956 = vpop.f32.mrf.mxu0
        %v1957 = vadd.f32 %v1769, %v1956
        %1958 = vmatprep.mubr.f32.mxu0 0.0
        %1959 = vmatmul.mubr.f32.gmra.mxu0 %v1791
        %v1960 = vpop.f32.mrf.mxu0
        %v1961 = vadd.f32 %v1774, %v1960
        %v1962 = vpop.f32.mrf.mxu0
        %v1963 = vadd.f32 %v1774, %v1962
        %1964 = vmatprep.mubr.f32.mxu0 0.0
        %1965 = vmatmul.mubr.f32.gmra.mxu0 %v1794
        %v1966 = vpop.f32.mrf.mxu0
        %v1967 = vadd.f32 %v1779, %v1966
        %v1968 = vpop.f32.mrf.mxu0
        %v1969 = vadd.f32 %v1779, %v1968
        %1970 = vmatprep.mubr.f32.mxu0 0.0
        %1971 = vmatmul.mubr.f32.gmra.mxu0 %v1797
        %v1972 = vpop.f32.mrf.mxu0
        %v1973 = vadd.f32 %v1784, %v1972
        %v1974 = vpop.f32.mrf.mxu0
        %v1975 = vadd.f32 %v1784, %v1974
        %1976 = vdwg.mxu0
        %v1977 = vsub.f32 %v802, %v1348
        %v1978 = vsub.f32 %v802, %v1350
        %v1979 = vsub.f32 %v802, %v1467
        %v1980 = vsub.f32 %v802, %v1469
        %v1981 = vsub.f32 %v807, %v1354
        %v1982 = vsub.f32 %v807, %v1356
        %v1983 = vsub.f32 %v807, %v1473
        %v1984 = vsub.f32 %v807, %v1475
        %v1985 = vsub.f32 %v812, %v1360
        %v1986 = vsub.f32 %v812, %v1362
        %v1987 = vsub.f32 %v812, %v1479
        %v1988 = vsub.f32 %v812, %v1481
        %v1989 = vsub.f32 %v817, %v1366
        %v1990 = vsub.f32 %v817, %v1368
        %v1991 = vsub.f32 %v817, %v1485
        %v1992 = vsub.f32 %v817, %v1487
        %v1993 = vadd.f32 %v1977, %v1866
        %v1994 = vadd.f32 %v1978, %v1868
        %v1995 = vadd.f32 %v1979, %v1955
        %v1996 = vadd.f32 %v1980, %v1957
        %v1997 = vadd.f32 %v1981, %v1872
        %v1998 = vadd.f32 %v1982, %v1874
        %v1999 = vadd.f32 %v1983, %v1961
        %v2000 = vadd.f32 %v1984, %v1963
        %v2001 = vadd.f32 %v1985, %v1878
        %v2002 = vadd.f32 %v1986, %v1880
        %v2003 = vadd.f32 %v1987, %v1967
        %v2004 = vadd.f32 %v1988, %v1969
        %v2005 = vadd.f32 %v1989, %v1884
        %v2006 = vadd.f32 %v1990, %v1886
        %v2007 = vadd.f32 %v1991, %v1973
        %v2008 = vadd.f32 %v1992, %v1975
        %v2009 = vld [vmem:[#allocation8] sm:$0xff]
        %v2010 = vld [vmem:[#allocation8 + $0x8] sm:$0xff]
        %v2011 = vld [vmem:[#allocation8 + $0x10] sm:$0xff]
        %v2012 = vld [vmem:[#allocation8 + $0x18] sm:$0xff]
        %v2013 = vld [vmem:[%s11] sm:$0xff]
        %v2014 = vld [vmem:[%s11 + $0x8] sm:$0xff]
        %v2015 = vld [vmem:[%s11 + $0x10] sm:$0xff]
        %v2016 = vld [vmem:[%s11 + $0x18] sm:$0xff]
        %2018 = vset.pattern.permute.xlu0 0
        %2019 = vperm.xlu0 %2018, %v2013
        %v2020 = vpop.permute.xlu0 %2019
        %2023 = vset.pattern.permute.xlu0 0
        %2024 = vperm.xlu0 %2023, %v2014
        %v2025 = vpop.permute.xlu0 %2024
        %2028 = vset.pattern.permute.xlu0 0
        %2029 = vperm.xlu0 %2028, %v2015
        %v2030 = vpop.permute.xlu0 %2029
        %2033 = vset.pattern.permute.xlu0 0
        %2034 = vperm.xlu0 %2033, %v2016
        %v2035 = vpop.permute.xlu0 %2034
        %v2038 = vsel %vm1786, %v2009, 0
        %v2041 = vsel %vm1786, %v2010, 0
        %v2044 = vsel %vm1786, %v2011, 0
        %v2047 = vsel %vm1786, %v2012, 0
        %2049 = vmatprep.subr.mxu0 0.0
        %2050 = vmatpush1.msra.mxu0 0.0
        %2051 = vmatprep.subr.mxu0 0.0
        %2052 = vmatpush1.msra.mxu0 0.0
        %2053 = vmatprep.subr.mxu0 0.0
        %2054 = vmatpush1.msra.mxu0 0.0
        %2055 = vmatprep.subr.mxu0 0.0
        %2056 = vmatpush1.msra.mxu0 0.0
        %2057 = vmatprep.subr.mxu0 0.0
        %2058 = vmatpush1.msra.mxu0 0.0
        %2059 = vmatprep.subr.mxu0 0.0
        %2060 = vmatpush1.msra.mxu0 0.0
        %2061 = vmatprep.subr.mxu0 0.0
        %2062 = vmatpush1.msra.mxu0 0.0
        %2063 = vmatprep.subr.mxu0 0.0
        %2064 = vmatpush1.msra.mxu0 0.0
        %2065 = vmatprep.subr.mxu0 0.0
        %2066 = vmatpush1.msra.mxu0 0.0
        %2067 = vmatprep.subr.mxu0 0.0
        %2068 = vmatpush1.msra.mxu0 0.0
        %2069 = vmatprep.subr.mxu0 0.0
        %2070 = vmatpush1.msra.mxu0 0.0
        %2071 = vmatprep.subr.mxu0 0.0
        %2072 = vmatpush1.msra.mxu0 0.0
        %2073 = vmatprep.subr.mxu0 %v2006
        %2074 = vmatpush1.msra.mxu0 %v2005
        %2075 = vmatprep.subr.mxu0 %v2002
        %2076 = vmatpush1.msra.mxu0 %v2001
        %2077 = vmatprep.subr.mxu0 %v1998
        %2078 = vmatpush1.msra.mxu0 %v1997
        %2079 = vmatprep.subr.mxu0 %v1994
        %2080 = vmatpush1.msra.mxu0 %v1993
        %2081 = vmatprep.subr.mxu0 0.0
        %2082 = vmatpush2.msra.mxu0 0.0
        %2083 = vmatprep.subr.mxu0 0.0
        %2084 = vmatpush2.msra.mxu0 0.0
        %2085 = vmatprep.subr.mxu0 0.0
        %2086 = vmatpush2.msra.mxu0 0.0
        %2087 = vmatprep.subr.mxu0 0.0
        %2088 = vmatpush2.msra.mxu0 0.0
        %2089 = vmatprep.subr.mxu0 0.0
        %2090 = vmatpush2.msra.mxu0 0.0
        %2091 = vmatprep.subr.mxu0 0.0
        %2092 = vmatpush2.msra.mxu0 0.0
        %2093 = vmatprep.subr.mxu0 0.0
        %2094 = vmatpush2.msra.mxu0 0.0
        %2095 = vmatprep.subr.mxu0 0.0
        %2096 = vmatpush2.msra.mxu0 0.0
        %2097 = vmatprep.subr.mxu0 0.0
        %2098 = vmatpush2.msra.mxu0 0.0
        %2099 = vmatprep.subr.mxu0 0.0
        %2100 = vmatpush2.msra.mxu0 0.0
        %2101 = vmatprep.subr.mxu0 0.0
        %2102 = vmatpush2.msra.mxu0 0.0
        %2103 = vmatprep.subr.mxu0 0.0
        %2104 = vmatpush2.msra.mxu0 0.0
        %2105 = vmatprep.subr.mxu0 0.0
        %2106 = vmatpush2.msra.mxu0 0.0
        %2107 = vmatprep.subr.mxu0 0.0
        %2108 = vmatpush2.msra.mxu0 0.0
        %2109 = vmatprep.subr.mxu0 0.0
        %2110 = vmatpush2.msra.mxu0 0.0
        %2111 = vmatprep.subr.mxu0 0.0
        %2112 = vmatpush2.msra.mxu0 0.0
        %2113 = vmatprep.mubr.f32.mxu0 0.0
        %2114 = vmatmul.mubr.f32.gmra.mxu0 %v2038
        %v2115 = vpop.f32.mrf.mxu0
        %v2116 = vadd.f32 %v2020, %v2115
        %v2117 = vpop.f32.mrf.mxu0
        %v2118 = vadd.f32 %v2020, %v2117
        %2119 = vmatprep.mubr.f32.mxu0 0.0
        %2120 = vmatmul.mubr.f32.gmra.mxu0 %v2041
        %v2121 = vpop.f32.mrf.mxu0
        %v2122 = vadd.f32 %v2025, %v2121
        %v2123 = vpop.f32.mrf.mxu0
        %v2124 = vadd.f32 %v2025, %v2123
        %2125 = vmatprep.mubr.f32.mxu0 0.0
        %2126 = vmatmul.mubr.f32.gmra.mxu0 %v2044
        %v2127 = vpop.f32.mrf.mxu0
        %v2128 = vadd.f32 %v2030, %v2127
        %v2129 = vpop.f32.mrf.mxu0
        %v2130 = vadd.f32 %v2030, %v2129
        %2131 = vmatprep.mubr.f32.mxu0 0.0
        %2132 = vmatmul.mubr.f32.gmra.mxu0 %v2047
        %v2133 = vpop.f32.mrf.mxu0
        %v2134 = vadd.f32 %v2035, %v2133
        %v2135 = vpop.f32.mrf.mxu0
        %v2136 = vadd.f32 %v2035, %v2135
        %2137 = vdwg.mxu0
        %2138 = vmatprep.subr.mxu0 0.0
        %2139 = vmatpush1.msra.mxu0 0.0
        %2140 = vmatprep.subr.mxu0 0.0
        %2141 = vmatpush1.msra.mxu0 0.0
        %2142 = vmatprep.subr.mxu0 0.0
        %2143 = vmatpush1.msra.mxu0 0.0
        %2144 = vmatprep.subr.mxu0 0.0
        %2145 = vmatpush1.msra.mxu0 0.0
        %2146 = vmatprep.subr.mxu0 0.0
        %2147 = vmatpush1.msra.mxu0 0.0
        %2148 = vmatprep.subr.mxu0 0.0
        %2149 = vmatpush1.msra.mxu0 0.0
        %2150 = vmatprep.subr.mxu0 0.0
        %2151 = vmatpush1.msra.mxu0 0.0
        %2152 = vmatprep.subr.mxu0 0.0
        %2153 = vmatpush1.msra.mxu0 0.0
        %2154 = vmatprep.subr.mxu0 0.0
        %2155 = vmatpush1.msra.mxu0 0.0
        %2156 = vmatprep.subr.mxu0 0.0
        %2157 = vmatpush1.msra.mxu0 0.0
        %2158 = vmatprep.subr.mxu0 0.0
        %2159 = vmatpush1.msra.mxu0 0.0
        %2160 = vmatprep.subr.mxu0 0.0
        %2161 = vmatpush1.msra.mxu0 0.0
        %2162 = vmatprep.subr.mxu0 %v2008
        %2163 = vmatpush1.msra.mxu0 %v2007
        %2164 = vmatprep.subr.mxu0 %v2004
        %2165 = vmatpush1.msra.mxu0 %v2003
        %2166 = vmatprep.subr.mxu0 %v2000
        %2167 = vmatpush1.msra.mxu0 %v1999
        %2168 = vmatprep.subr.mxu0 %v1996
        %2169 = vmatpush1.msra.mxu0 %v1995
        %2170 = vmatprep.subr.mxu0 0.0
        %2171 = vmatpush2.msra.mxu0 0.0
        %2172 = vmatprep.subr.mxu0 0.0
        %2173 = vmatpush2.msra.mxu0 0.0
        %2174 = vmatprep.subr.mxu0 0.0
        %2175 = vmatpush2.msra.mxu0 0.0
        %2176 = vmatprep.subr.mxu0 0.0
        %2177 = vmatpush2.msra.mxu0 0.0
        %2178 = vmatprep.subr.mxu0 0.0
        %2179 = vmatpush2.msra.mxu0 0.0
        %2180 = vmatprep.subr.mxu0 0.0
        %2181 = vmatpush2.msra.mxu0 0.0
        %2182 = vmatprep.subr.mxu0 0.0
        %2183 = vmatpush2.msra.mxu0 0.0
        %2184 = vmatprep.subr.mxu0 0.0
        %2185 = vmatpush2.msra.mxu0 0.0
        %2186 = vmatprep.subr.mxu0 0.0
        %2187 = vmatpush2.msra.mxu0 0.0
        %2188 = vmatprep.subr.mxu0 0.0
        %2189 = vmatpush2.msra.mxu0 0.0
        %2190 = vmatprep.subr.mxu0 0.0
        %2191 = vmatpush2.msra.mxu0 0.0
        %2192 = vmatprep.subr.mxu0 0.0
        %2193 = vmatpush2.msra.mxu0 0.0
        %2194 = vmatprep.subr.mxu0 0.0
        %2195 = vmatpush2.msra.mxu0 0.0
        %2196 = vmatprep.subr.mxu0 0.0
        %2197 = vmatpush2.msra.mxu0 0.0
        %2198 = vmatprep.subr.mxu0 0.0
        %2199 = vmatpush2.msra.mxu0 0.0
        %2200 = vmatprep.subr.mxu0 0.0
        %2201 = vmatpush2.msra.mxu0 0.0
        %2202 = vmatprep.mubr.f32.mxu0 0.0
        %2203 = vmatmul.mubr.f32.gmra.mxu0 %v2038
        %v2204 = vpop.f32.mrf.mxu0
        %v2205 = vadd.f32 %v2020, %v2204
        %v2206 = vpop.f32.mrf.mxu0
        %v2207 = vadd.f32 %v2020, %v2206
        %2208 = vmatprep.mubr.f32.mxu0 0.0
        %2209 = vmatmul.mubr.f32.gmra.mxu0 %v2041
        %v2210 = vpop.f32.mrf.mxu0
        %v2211 = vadd.f32 %v2025, %v2210
        %v2212 = vpop.f32.mrf.mxu0
        %v2213 = vadd.f32 %v2025, %v2212
        %2214 = vmatprep.mubr.f32.mxu0 0.0
        %2215 = vmatmul.mubr.f32.gmra.mxu0 %v2044
        %v2216 = vpop.f32.mrf.mxu0
        %v2217 = vadd.f32 %v2030, %v2216
        %v2218 = vpop.f32.mrf.mxu0
        %v2219 = vadd.f32 %v2030, %v2218
        %2220 = vmatprep.mubr.f32.mxu0 0.0
        %2221 = vmatmul.mubr.f32.gmra.mxu0 %v2047
        %v2222 = vpop.f32.mrf.mxu0
        %v2223 = vadd.f32 %v2035, %v2222
        %v2224 = vpop.f32.mrf.mxu0
        %v2225 = vadd.f32 %v2035, %v2224
        %2226 = vdwg.mxu0
        %v2227 = vmax.f32 %v2116, 0.0
        %v2228 = vmax.f32 %v2118, 0.0
        %v2229 = vmax.f32 %v2205, 0.0
        %v2230 = vmax.f32 %v2207, 0.0
        %v2231 = vmax.f32 %v2122, 0.0
        %v2232 = vmax.f32 %v2124, 0.0
        %v2233 = vmax.f32 %v2211, 0.0
        %v2234 = vmax.f32 %v2213, 0.0
        %v2235 = vmax.f32 %v2128, 0.0
        %v2236 = vmax.f32 %v2130, 0.0
        %v2237 = vmax.f32 %v2217, 0.0
        %v2238 = vmax.f32 %v2219, 0.0
        %v2239 = vmax.f32 %v2134, 0.0
        %v2240 = vmax.f32 %v2136, 0.0
        %v2241 = vmax.f32 %v2223, 0.0
        %v2242 = vmax.f32 %v2225, 0.0
        %v2243 = vld [vmem:[#allocation10] sm:$0xff]
        %v2244 = vld [vmem:[#allocation10 + $0x8] sm:$0xff]
        %v2245 = vld [vmem:[#allocation10 + $0x10] sm:$0xff]
        %v2246 = vld [vmem:[#allocation10 + $0x18] sm:$0xff]
        %v2247 = vld [vmem:[%s13] sm:$0xff]
        %v2248 = vld [vmem:[%s13 + $0x8] sm:$0xff]
        %v2249 = vld [vmem:[%s13 + $0x10] sm:$0xff]
        %v2250 = vld [vmem:[%s13 + $0x18] sm:$0xff]
        %2252 = vset.pattern.permute.xlu0 0
        %2253 = vperm.xlu0 %2252, %v2247
        %v2254 = vpop.permute.xlu0 %2253
        %2257 = vset.pattern.permute.xlu0 0
        %2258 = vperm.xlu0 %2257, %v2248
        %v2259 = vpop.permute.xlu0 %2258
        %2262 = vset.pattern.permute.xlu0 0
        %2263 = vperm.xlu0 %2262, %v2249
        %v2264 = vpop.permute.xlu0 %2263
        %2267 = vset.pattern.permute.xlu0 0
        %2268 = vperm.xlu0 %2267, %v2250
        %v2269 = vpop.permute.xlu0 %2268
        %v2272 = vsel %vm1786, %v2243, 0
        %v2275 = vsel %vm1786, %v2244, 0
        %v2278 = vsel %vm1786, %v2245, 0
        %v2281 = vsel %vm1786, %v2246, 0
        %2283 = vmatprep.subr.mxu0 0.0
        %2284 = vmatpush1.msra.mxu0 0.0
        %2285 = vmatprep.subr.mxu0 0.0
        %2286 = vmatpush1.msra.mxu0 0.0
        %2287 = vmatprep.subr.mxu0 0.0
        %2288 = vmatpush1.msra.mxu0 0.0
        %2289 = vmatprep.subr.mxu0 0.0
        %2290 = vmatpush1.msra.mxu0 0.0
        %2291 = vmatprep.subr.mxu0 0.0
        %2292 = vmatpush1.msra.mxu0 0.0
        %2293 = vmatprep.subr.mxu0 0.0
        %2294 = vmatpush1.msra.mxu0 0.0
        %2295 = vmatprep.subr.mxu0 0.0
        %2296 = vmatpush1.msra.mxu0 0.0
        %2297 = vmatprep.subr.mxu0 0.0
        %2298 = vmatpush1.msra.mxu0 0.0
        %2299 = vmatprep.subr.mxu0 0.0
        %2300 = vmatpush1.msra.mxu0 0.0
        %2301 = vmatprep.subr.mxu0 0.0
        %2302 = vmatpush1.msra.mxu0 0.0
        %2303 = vmatprep.subr.mxu0 0.0
        %2304 = vmatpush1.msra.mxu0 0.0
        %2305 = vmatprep.subr.mxu0 0.0
        %2306 = vmatpush1.msra.mxu0 0.0
        %2307 = vmatprep.subr.mxu0 %v2240
        %2308 = vmatpush1.msra.mxu0 %v2239
        %2309 = vmatprep.subr.mxu0 %v2236
        %2310 = vmatpush1.msra.mxu0 %v2235
        %2311 = vmatprep.subr.mxu0 %v2232
        %2312 = vmatpush1.msra.mxu0 %v2231
        %2313 = vmatprep.subr.mxu0 %v2228
        %2314 = vmatpush1.msra.mxu0 %v2227
        %2315 = vmatprep.subr.mxu0 0.0
        %2316 = vmatpush2.msra.mxu0 0.0
        %2317 = vmatprep.subr.mxu0 0.0
        %2318 = vmatpush2.msra.mxu0 0.0
        %2319 = vmatprep.subr.mxu0 0.0
        %2320 = vmatpush2.msra.mxu0 0.0
        %2321 = vmatprep.subr.mxu0 0.0
        %2322 = vmatpush2.msra.mxu0 0.0
        %2323 = vmatprep.subr.mxu0 0.0
        %2324 = vmatpush2.msra.mxu0 0.0
        %2325 = vmatprep.subr.mxu0 0.0
        %2326 = vmatpush2.msra.mxu0 0.0
        %2327 = vmatprep.subr.mxu0 0.0
        %2328 = vmatpush2.msra.mxu0 0.0
        %2329 = vmatprep.subr.mxu0 0.0
        %2330 = vmatpush2.msra.mxu0 0.0
        %2331 = vmatprep.subr.mxu0 0.0
        %2332 = vmatpush2.msra.mxu0 0.0
        %2333 = vmatprep.subr.mxu0 0.0
        %2334 = vmatpush2.msra.mxu0 0.0
        %2335 = vmatprep.subr.mxu0 0.0
        %2336 = vmatpush2.msra.mxu0 0.0
        %2337 = vmatprep.subr.mxu0 0.0
        %2338 = vmatpush2.msra.mxu0 0.0
        %2339 = vmatprep.subr.mxu0 0.0
        %2340 = vmatpush2.msra.mxu0 0.0
        %2341 = vmatprep.subr.mxu0 0.0
        %2342 = vmatpush2.msra.mxu0 0.0
        %2343 = vmatprep.subr.mxu0 0.0
        %2344 = vmatpush2.msra.mxu0 0.0
        %2345 = vmatprep.subr.mxu0 0.0
        %2346 = vmatpush2.msra.mxu0 0.0
        %2347 = vmatprep.mubr.f32.mxu0 0.0
        %2348 = vmatmul.mubr.f32.gmra.mxu0 %v2272
        %v2349 = vpop.f32.mrf.mxu0
        %v2350 = vadd.f32 %v2254, %v2349
        %v2351 = vpop.f32.mrf.mxu0
        %v2352 = vadd.f32 %v2254, %v2351
        %2353 = vmatprep.mubr.f32.mxu0 0.0
        %2354 = vmatmul.mubr.f32.gmra.mxu0 %v2275
        %v2355 = vpop.f32.mrf.mxu0
        %v2356 = vadd.f32 %v2259, %v2355
        %v2357 = vpop.f32.mrf.mxu0
        %v2358 = vadd.f32 %v2259, %v2357
        %2359 = vmatprep.mubr.f32.mxu0 0.0
        %2360 = vmatmul.mubr.f32.gmra.mxu0 %v2278
        %v2361 = vpop.f32.mrf.mxu0
        %v2362 = vadd.f32 %v2264, %v2361
        %v2363 = vpop.f32.mrf.mxu0
        %v2364 = vadd.f32 %v2264, %v2363
        %2365 = vmatprep.mubr.f32.mxu0 0.0
        %2366 = vmatmul.mubr.f32.gmra.mxu0 %v2281
        %v2367 = vpop.f32.mrf.mxu0
        %v2368 = vadd.f32 %v2269, %v2367
        %v2369 = vpop.f32.mrf.mxu0
        %v2370 = vadd.f32 %v2269, %v2369
        %2371 = vdwg.mxu0
        %2372 = vmatprep.subr.mxu0 0.0
        %2373 = vmatpush1.msra.mxu0 0.0
        %2374 = vmatprep.subr.mxu0 0.0
        %2375 = vmatpush1.msra.mxu0 0.0
        %2376 = vmatprep.subr.mxu0 0.0
        %2377 = vmatpush1.msra.mxu0 0.0
        %2378 = vmatprep.subr.mxu0 0.0
        %2379 = vmatpush1.msra.mxu0 0.0
        %2380 = vmatprep.subr.mxu0 0.0
        %2381 = vmatpush1.msra.mxu0 0.0
        %2382 = vmatprep.subr.mxu0 0.0
        %2383 = vmatpush1.msra.mxu0 0.0
        %2384 = vmatprep.subr.mxu0 0.0
        %2385 = vmatpush1.msra.mxu0 0.0
        %2386 = vmatprep.subr.mxu0 0.0
        %2387 = vmatpush1.msra.mxu0 0.0
        %2388 = vmatprep.subr.mxu0 0.0
        %2389 = vmatpush1.msra.mxu0 0.0
        %2390 = vmatprep.subr.mxu0 0.0
        %2391 = vmatpush1.msra.mxu0 0.0
        %2392 = vmatprep.subr.mxu0 0.0
        %2393 = vmatpush1.msra.mxu0 0.0
        %2394 = vmatprep.subr.mxu0 0.0
        %2395 = vmatpush1.msra.mxu0 0.0
        %2396 = vmatprep.subr.mxu0 %v2242
        %2397 = vmatpush1.msra.mxu0 %v2241
        %2398 = vmatprep.subr.mxu0 %v2238
        %2399 = vmatpush1.msra.mxu0 %v2237
        %2400 = vmatprep.subr.mxu0 %v2234
        %2401 = vmatpush1.msra.mxu0 %v2233
        %2402 = vmatprep.subr.mxu0 %v2230
        %2403 = vmatpush1.msra.mxu0 %v2229
        %2404 = vmatprep.subr.mxu0 0.0
        %2405 = vmatpush2.msra.mxu0 0.0
        %2406 = vmatprep.subr.mxu0 0.0
        %2407 = vmatpush2.msra.mxu0 0.0
        %2408 = vmatprep.subr.mxu0 0.0
        %2409 = vmatpush2.msra.mxu0 0.0
        %2410 = vmatprep.subr.mxu0 0.0
        %2411 = vmatpush2.msra.mxu0 0.0
        %2412 = vmatprep.subr.mxu0 0.0
        %2413 = vmatpush2.msra.mxu0 0.0
        %2414 = vmatprep.subr.mxu0 0.0
        %2415 = vmatpush2.msra.mxu0 0.0
        %2416 = vmatprep.subr.mxu0 0.0
        %2417 = vmatpush2.msra.mxu0 0.0
        %2418 = vmatprep.subr.mxu0 0.0
        %2419 = vmatpush2.msra.mxu0 0.0
        %2420 = vmatprep.subr.mxu0 0.0
        %2421 = vmatpush2.msra.mxu0 0.0
        %2422 = vmatprep.subr.mxu0 0.0
        %2423 = vmatpush2.msra.mxu0 0.0
        %2424 = vmatprep.subr.mxu0 0.0
        %2425 = vmatpush2.msra.mxu0 0.0
        %2426 = vmatprep.subr.mxu0 0.0
        %2427 = vmatpush2.msra.mxu0 0.0
        %2428 = vmatprep.subr.mxu0 0.0
        %2429 = vmatpush2.msra.mxu0 0.0
        %2430 = vmatprep.subr.mxu0 0.0
        %2431 = vmatpush2.msra.mxu0 0.0
        %2432 = vmatprep.subr.mxu0 0.0
        %2433 = vmatpush2.msra.mxu0 0.0
        %2434 = vmatprep.subr.mxu0 0.0
        %2435 = vmatpush2.msra.mxu0 0.0
        %2436 = vmatprep.mubr.f32.mxu0 0.0
        %2437 = vmatmul.mubr.f32.gmra.mxu0 %v2272
        %v2438 = vpop.f32.mrf.mxu0
        %v2439 = vadd.f32 %v2254, %v2438
        %v2440 = vpop.f32.mrf.mxu0
        %v2441 = vadd.f32 %v2254, %v2440
        %2442 = vmatprep.mubr.f32.mxu0 0.0
        %2443 = vmatmul.mubr.f32.gmra.mxu0 %v2275
        %v2444 = vpop.f32.mrf.mxu0
        %v2445 = vadd.f32 %v2259, %v2444
        %v2446 = vpop.f32.mrf.mxu0
        %v2447 = vadd.f32 %v2259, %v2446
        %2448 = vmatprep.mubr.f32.mxu0 0.0
        %2449 = vmatmul.mubr.f32.gmra.mxu0 %v2278
        %v2450 = vpop.f32.mrf.mxu0
        %v2451 = vadd.f32 %v2264, %v2450
        %v2452 = vpop.f32.mrf.mxu0
        %v2453 = vadd.f32 %v2264, %v2452
        %2454 = vmatprep.mubr.f32.mxu0 0.0
        %2455 = vmatmul.mubr.f32.gmra.mxu0 %v2281
        %v2456 = vpop.f32.mrf.mxu0
        %v2457 = vadd.f32 %v2269, %v2456
        %v2458 = vpop.f32.mrf.mxu0
        %v2459 = vadd.f32 %v2269, %v2458
        %2460 = vdwg.mxu0
        %v2461 = vmax.f32 %v2350, %v2352
        %v2462 = vmax.f32 %v2356, %v2358
        %v2463 = vmax.f32 %v2362, %v2364
        %v2464 = vmax.f32 %v2368, %v2370
        %v2465 = vmax.f32 %v2461, %v2439
        %v2466 = vmax.f32 %v2462, %v2445
        %v2467 = vmax.f32 %v2463, %v2451
        %v2468 = vmax.f32 %v2464, %v2457
        %v2469 = vmax.f32 %v2465, %v2441
        %v2470 = vmax.f32 %v2466, %v2447
        %v2471 = vmax.f32 %v2467, %v2453
        %v2472 = vmax.f32 %v2468, %v2459
        %v2473 = vsub.f32 %v2350, %v2469
        %v2474 = vsub.f32 %v2356, %v2470
        %v2475 = vsub.f32 %v2362, %v2471
        %v2476 = vsub.f32 %v2368, %v2472
        %v2477 = vmul.f32 %v2473, 1.442695
        %v2478 = vpow.pop %v2477
        %v2479 = vmul.f32 %v2474, 1.442695
        %v2480 = vpow.pop %v2479
        %v2481 = vmul.f32 %v2475, 1.442695
        %v2482 = vpow.pop %v2481
        %v2483 = vmul.f32 %v2476, 1.442695
        %v2484 = vpow.pop %v2483
        %v2485 = vadd.f32 %v1372, %v1866
        %v2486 = vadd.f32 %v1378, %v1872
        %v2487 = vadd.f32 %v1384, %v1878
        %v2488 = vadd.f32 %v1390, %v1884
        %v2489 = vmul.f32 %v2478, %v2485
        %v2490 = vmul.f32 %v2480, %v2486
        %v2491 = vmul.f32 %v2482, %v2487
        %v2492 = vmul.f32 %v2484, %v2488
        %v2493 = vsub.f32 %v2352, %v2469
        %v2494 = vsub.f32 %v2358, %v2470
        %v2495 = vsub.f32 %v2364, %v2471
        %v2496 = vsub.f32 %v2370, %v2472
        %v2497 = vmul.f32 %v2493, 1.442695
        %v2498 = vpow.pop %v2497
        %v2499 = vmul.f32 %v2494, 1.442695
        %v2500 = vpow.pop %v2499
        %v2501 = vmul.f32 %v2495, 1.442695
        %v2502 = vpow.pop %v2501
        %v2503 = vmul.f32 %v2496, 1.442695
        %v2504 = vpow.pop %v2503
        %v2505 = vadd.f32 %v2478, %v2498
        %v2506 = vadd.f32 %v2480, %v2500
        %v2507 = vadd.f32 %v2482, %v2502
        %v2508 = vadd.f32 %v2484, %v2504
        %v2509 = vadd.f32 %v1374, %v1868
        %v2510 = vadd.f32 %v1380, %v1874
        %v2511 = vadd.f32 %v1386, %v1880
        %v2512 = vadd.f32 %v1392, %v1886
        %v2513 = vmul.f32 %v2498, %v2509
        %v2514 = vmul.f32 %v2500, %v2510
        %v2515 = vmul.f32 %v2502, %v2511
        %v2516 = vmul.f32 %v2504, %v2512
        %v2517 = vadd.f32 %v2489, %v2513
        %v2518 = vadd.f32 %v2490, %v2514
        %v2519 = vadd.f32 %v2491, %v2515
        %v2520 = vadd.f32 %v2492, %v2516
        %v2521 = vsub.f32 %v2439, %v2469
        %v2522 = vsub.f32 %v2445, %v2470
        %v2523 = vsub.f32 %v2451, %v2471
        %v2524 = vsub.f32 %v2457, %v2472
        %v2525 = vmul.f32 %v2521, 1.442695
        %v2526 = vpow.pop %v2525
        %v2527 = vmul.f32 %v2522, 1.442695
        %v2528 = vpow.pop %v2527
        %v2529 = vmul.f32 %v2523, 1.442695
        %v2530 = vpow.pop %v2529
        %v2531 = vmul.f32 %v2524, 1.442695
        %v2532 = vpow.pop %v2531
        %v2533 = vadd.f32 %v2505, %v2526
        %v2534 = vadd.f32 %v2506, %v2528
        %v2535 = vadd.f32 %v2507, %v2530
        %v2536 = vadd.f32 %v2508, %v2532
        %v2537 = vadd.f32 %v1491, %v1955
        %v2538 = vadd.f32 %v1497, %v1961
        %v2539 = vadd.f32 %v1503, %v1967
        %v2540 = vadd.f32 %v1509, %v1973
        %v2541 = vmul.f32 %v2526, %v2537
        %v2542 = vmul.f32 %v2528, %v2538
        %v2543 = vmul.f32 %v2530, %v2539
        %v2544 = vmul.f32 %v2532, %v2540
        %v2545 = vadd.f32 %v2517, %v2541
        %v2546 = vadd.f32 %v2518, %v2542
        %v2547 = vadd.f32 %v2519, %v2543
        %v2548 = vadd.f32 %v2520, %v2544
        %v2549 = vsub.f32 %v2441, %v2469
        %v2550 = vsub.f32 %v2447, %v2470
        %v2551 = vsub.f32 %v2453, %v2471
        %v2552 = vsub.f32 %v2459, %v2472
        %v2553 = vmul.f32 %v2549, 1.442695
        %v2554 = vpow.pop %v2553
        %v2555 = vmul.f32 %v2550, 1.442695
        %v2556 = vpow.pop %v2555
        %v2557 = vmul.f32 %v2551, 1.442695
        %v2558 = vpow.pop %v2557
        %v2559 = vmul.f32 %v2552, 1.442695
        %v2560 = vpow.pop %v2559
        %v2561 = vadd.f32 %v2533, %v2554
        %v2562 = vadd.f32 %v2534, %v2556
        %v2563 = vadd.f32 %v2535, %v2558
        %v2564 = vadd.f32 %v2536, %v2560
        %v2565 = vadd.f32 %v1493, %v1957
        %v2566 = vadd.f32 %v1499, %v1963
        %v2567 = vadd.f32 %v1505, %v1969
        %v2568 = vadd.f32 %v1511, %v1975
        %v2569 = vmul.f32 %v2554, %v2565
        %v2570 = vmul.f32 %v2556, %v2566
        %v2571 = vmul.f32 %v2558, %v2567
        %v2572 = vmul.f32 %v2560, %v2568
        %v2573 = vadd.f32 %v2545, %v2569
        %v2574 = vadd.f32 %v2546, %v2570
        %v2575 = vadd.f32 %v2547, %v2571
        %v2576 = vadd.f32 %v2548, %v2572
        %v2577 = vrcp.pop %v2561
        %v2578 = vrcp.pop %v2562
        %v2579 = vrcp.pop %v2563
        %v2580 = vrcp.pop %v2564
        %v2581 = vmul.f32 %v2573, %v2577
        %v2582 = vmul.f32 %v2574, %v2578
        %v2583 = vmul.f32 %v2575, %v2579
        %v2584 = vmul.f32 %v2576, %v2580
        %v2585 = vld [vmem:[%s14] sm:$0xff]
        %v2586 = vld [vmem:[%s14 + $0x8] sm:$0xff]
        %v2587 = vld [vmem:[%s15] sm:$0xff]
        %v2588 = vld [vmem:[%s15 + $0x8] sm:$0xff]
        %2590 = vset.pattern.permute.xlu0 0
        %2591 = vperm.xlu0 %2590, %v2587
        %v2592 = vpop.permute.xlu0 %2591
        %2595 = vset.pattern.permute.xlu0 0
        %2596 = vperm.xlu0 %2595, %v2588
        %v2597 = vpop.permute.xlu0 %2596
        %v2600 = vsel %vm1786, %v2585, 0
        %v2603 = vsel %vm1786, %v2586, 0
        %2605 = vmatprep.subr.mxu0 0.0
        %2606 = vmatpush1.msra.mxu0 0.0
        %2607 = vmatprep.subr.mxu0 0.0
        %2608 = vmatpush1.msra.mxu0 0.0
        %2609 = vmatprep.subr.mxu0 0.0
        %2610 = vmatpush1.msra.mxu0 0.0
        %2611 = vmatprep.subr.mxu0 0.0
        %2612 = vmatpush1.msra.mxu0 0.0
        %2613 = vmatprep.subr.mxu0 0.0
        %2614 = vmatpush1.msra.mxu0 0.0
        %2615 = vmatprep.subr.mxu0 0.0
        %2616 = vmatpush1.msra.mxu0 0.0
        %2617 = vmatprep.subr.mxu0 0.0
        %2618 = vmatpush1.msra.mxu0 0.0
        %2619 = vmatprep.subr.mxu0 0.0
        %2620 = vmatpush1.msra.mxu0 0.0
        %2621 = vmatprep.subr.mxu0 0.0
        %2622 = vmatpush1.msra.mxu0 0.0
        %2623 = vmatprep.subr.mxu0 0.0
        %2624 = vmatpush1.msra.mxu0 0.0
        %2625 = vmatprep.subr.mxu0 0.0
        %2626 = vmatpush1.msra.mxu0 0.0
        %2627 = vmatprep.subr.mxu0 0.0
        %2628 = vmatpush1.msra.mxu0 0.0
        %2629 = vmatprep.subr.mxu0 0.0
        %2630 = vmatpush1.msra.mxu0 %v2584
        %2631 = vmatprep.subr.mxu0 0.0
        %2632 = vmatpush1.msra.mxu0 %v2583
        %2633 = vmatprep.subr.mxu0 0.0
        %2634 = vmatpush1.msra.mxu0 %v2582
        %2635 = vmatprep.subr.mxu0 0.0
        %2636 = vmatpush1.msra.mxu0 %v2581
        %2637 = vmatprep.subr.mxu0 0.0
        %2638 = vmatpush2.msra.mxu0 0.0
        %2639 = vmatprep.subr.mxu0 0.0
        %2640 = vmatpush2.msra.mxu0 0.0
        %2641 = vmatprep.subr.mxu0 0.0
        %2642 = vmatpush2.msra.mxu0 0.0
        %2643 = vmatprep.subr.mxu0 0.0
        %2644 = vmatpush2.msra.mxu0 0.0
        %2645 = vmatprep.subr.mxu0 0.0
        %2646 = vmatpush2.msra.mxu0 0.0
        %2647 = vmatprep.subr.mxu0 0.0
        %2648 = vmatpush2.msra.mxu0 0.0
        %2649 = vmatprep.subr.mxu0 0.0
        %2650 = vmatpush2.msra.mxu0 0.0
        %2651 = vmatprep.subr.mxu0 0.0
        %2652 = vmatpush2.msra.mxu0 0.0
        %2653 = vmatprep.subr.mxu0 0.0
        %2654 = vmatpush2.msra.mxu0 0.0
        %2655 = vmatprep.subr.mxu0 0.0
        %2656 = vmatpush2.msra.mxu0 0.0
        %2657 = vmatprep.subr.mxu0 0.0
        %2658 = vmatpush2.msra.mxu0 0.0
        %2659 = vmatprep.subr.mxu0 0.0
        %2660 = vmatpush2.msra.mxu0 0.0
        %2661 = vmatprep.subr.mxu0 0.0
        %2662 = vmatpush2.msra.mxu0 0.0
        %2663 = vmatprep.subr.mxu0 0.0
        %2664 = vmatpush2.msra.mxu0 0.0
        %2665 = vmatprep.subr.mxu0 0.0
        %2666 = vmatpush2.msra.mxu0 0.0
        %2667 = vmatprep.subr.mxu0 0.0
        %2668 = vmatpush2.msra.mxu0 0.0
        %2669 = vmatprep.mubr.f32.mxu0 0.0
        %2670 = vmatmul.mubr.f32.gmra.mxu0 %v2600
        %v2671 = vpop.f32.mrf.mxu0
        %v2672 = vadd.f32 %v2592, %v2671
        %v2673 = vpop.f32.mrf.mxu0
        %2674 = vmatprep.mubr.f32.mxu0 0.0
        %2675 = vmatmul.mubr.f32.gmra.mxu0 %v2603
        %v2676 = vpop.f32.mrf.mxu0
        %v2677 = vadd.f32 %v2597, %v2676
        %v2678 = vpop.f32.mrf.mxu0
        %2679 = vdwg.mxu0
        %v2680 = vadd.f32 %v2672, %v692
        %v2681 = vadd.f32 %v2677, %v693
        %2682 = vst [vmem:[%s678] sm:$0xff] %v2680
        %2683 = vst [vmem:[%s678 + $0x8] sm:$0xff] %v2681
        %s2684 = sand.u32 %s421, 1
        %s2685 = scalar_lea.sflag [#allocation4], %s2684
        %s2686 = sand.u32 %s421, 1
        %s2687 = smul.addr %s2686, 16
        %s2688 = scalar_lea.vmem [#allocation11], %s2687
        // Predicated region
        $region105: #{tpu_custom_call.1} parent=83 // pred_check
          %p2689 = pneg %p431
        $region106: #{tpu_custom_call.1} parent=83 // pred_check_branch
          %2691 = sbr.rel (%p2689) target = $region108
        $region107: #{tpu_custom_call.1} parent=83 // pred_region
          %s2693 = ssub.s32 256, 256
          %2694 = vsyncadd %s2685, %s2693
          %s2695 = smul.addr %s41, 4
          %s2696 = sadd.s32 %s42, %s2695
          %s2697 = smul.addr %s2696, 128
          %s2698 = scalar_lea.hbm %s16, %s2697
          %s2699 = sshll.u32 %s2688, 4
          %s2700 = int_to_ptr.vmem [resolvable:$true] %s2699
          %2705 = dma.vmem_to_hbm [thread:$0]  %s2700, 256, %s2698, %s2685, 128, 256, 8
        $region108: #{tpu_custom_call.1} parent=83 // pred_fallthru
          _
      $region84: #{tpu_custom_call.1} parent=5 // pred_fallthru
        _
      %p2706 = scmp.le.s32.totalorder 2, %s32
      // Predicated region
      $region109: #{tpu_custom_call.1} parent=5 // pred_check
        %p2707 = pneg %p2706
      $region110: #{tpu_custom_call.1} parent=5 // pred_check_branch
        %2709 = sbr.rel (%p2707) target = $region112
      $region111: #{tpu_custom_call.1} parent=5 // pred_region
        %s2710 = ssub.s32 %s32, 2
        // Predicated region
        $region113: #{tpu_custom_call.1} parent=111 // pred_check
          %p2711 = pneg %p437
        $region114: #{tpu_custom_call.1} parent=111 // pred_check_branch
          %2713 = sbr.rel (%p2711) target = $region116
        $region115: #{tpu_custom_call.1} parent=111 // pred_region
          %s2714 = sand.u32 %s422, 1
          %s2715 = scalar_lea.sflag [#allocation4], %s2714
          %s2716 = sand.u32 %s422, 1
          %s2717 = smul.addr %s2716, 16
          %s2718 = scalar_lea.vmem [#allocation11], %s2717
          %2719 = dma.done %s2715, 256
        $region116: #{tpu_custom_call.1} parent=111 // pred_fallthru
          _
      $region112: #{tpu_custom_call.1} parent=5 // pred_fallthru
        _
    $region6: #{tpu_custom_call.1} parent=1 // loop_footer
      %s36 = sadd.s32 1, %s32
    $region7: #{tpu_custom_call.1} parent=1 // loop_footer_branch
      %31 = sbr.rel target = $region3
    $region8: #{tpu_custom_call.1} parent=1 // loop_exit
      _
    %2720 = vsyncpa [#allocation3], 1
    %s2721 = scalar_lea.sflag [#allocation3], 1
    %2722 = vsyncpa %s2721, 1
    %2723 = vsyncpa [#allocation6], 1
    %s2724 = scalar_lea.sflag [#allocation6], 1
    %2725 = vsyncpa %s2724, 1
    %2726 = vsyncpa [#allocation9], 1
    %2727 = vsyncpa [#allocation4], 1
    %s2728 = scalar_lea.sflag [#allocation4], 1
    %2729 = vsyncpa %s2728, 1

</llo_original>
